<compile_context>
chip_gen: v7x
topology: tpu7x:2x2x1
jax: 0.10.0
libtpu: 0.0.40
codegen_flags: <defaults>
</compile_context>

<pallas_src>
import functools

import jax
import jax.numpy as jnp
from jax.experimental import pallas as pl
from jax.experimental.pallas import tpu as pltpu


def _round_up(n, m):
    return ((n + m - 1) // m) * m


# -----------------------------------------------------------------------------
# Fused Pallas kernel: encoder MLP -> residual quantization -> decoder MLP
# -----------------------------------------------------------------------------
def _rqvae_fused_kernel(*refs, n_enc, n_dec, n_levels, latent_dim):
    """Ref layout:
       inputs : x, (enc_w0, enc_b0, ...), cbs (L,K,Dp), cbs_T (L,Dp,K),
                (dec_w0, dec_b0, ...)
       outputs: decoded (TB, Din_pad), r_slab (TB, L*D), quantized (TB, L) i32
    """
    pos = 0
    x_ref = refs[pos]; pos += 1
    enc_refs = refs[pos:pos + 2 * n_enc]; pos += 2 * n_enc
    cbs_ref = refs[pos]; pos += 1          # (L, K, Dp)
    cbst_ref = refs[pos]; pos += 1         # (L, Dp, K)
    dec_refs = refs[pos:pos + 2 * n_dec]; pos += 2 * n_dec
    dec_out, r_out, q_out = refs[pos:pos + 3]

    # ---- encoder MLP (hidden activations never leave vregs/VMEM) ------------
    h = x_ref[...]
    for i in range(n_enc):
        w = enc_refs[2 * i][...]
        b = enc_refs[2 * i + 1][...]          # (1, Dout_pad)
        h = jnp.dot(h, w, preferred_element_type=jnp.float32) + b
        if i < n_enc - 1:
            h = jnp.maximum(h, 0.0)
    encoded = h                               # (TB, Dp)  (padded cols are 0)

    TB = encoded.shape[0]
    K = cbs_ref.shape[1]

    # Hoisted once, reused every level (JAX does not CSE broadcast_in_dim).
    col_k = jax.lax.broadcasted_iota(jnp.int32, (TB, K), 1)

    residual = encoded
    z_hat = jnp.zeros_like(encoded)
    r_cols = []
    idx_cols = []

    # Fully unrolled level loop (small L) -> full LLO scheduler visibility.
    for l in range(n_levels):
        cb = cbs_ref[l]                       # (K, Dp)  gather orientation
        cbt = cbst_ref[l]                     # (Dp, K)  cross-term orientation
        cb2 = jnp.sum(cbt * cbt, axis=0, keepdims=True)        # (1, K)
        # cross = r @ C_l^T via the pre-transposed codebook (no XLU transpose).
        cross = jnp.dot(residual, cbt, preferred_element_type=jnp.float32)
        # ||r||^2 is constant per row -> irrelevant for the argmin; drop it.
        dist = cb2 - 2.0 * cross                                # (TB, K)

        min_d = jnp.min(dist, axis=-1, keepdims=True)
        # First-occurrence argmin (matches torch.argmin tie-breaking).
        idx = jnp.min(jnp.where(dist <= min_d, col_k, K),
                      axis=-1, keepdims=True)                   # (TB, 1) i32
        onehot = (col_k == idx).astype(jnp.float32)             # (TB, K)
        emb = jnp.dot(onehot, cb,
                      preferred_element_type=jnp.float32)       # (TB, Dp)

        r_cols.append(residual[:, :latent_dim])                 # logical D only
        idx_cols.append(idx)

        z_hat = z_hat + emb
        residual = residual - emb

    # Single lane-packed stores instead of per-level masked writes.
    r_out[...] = jnp.concatenate(r_cols, axis=-1)               # (TB, L*D)
    q_out[...] = jnp.concatenate(idx_cols, axis=-1)             # (TB, L)

    # ---- decoder MLP ---------------------------------------------------------
    h = z_hat
    for i in range(n_dec):
        w = dec_refs[2 * i][...]
        b = dec_refs[2 * i + 1][...]
        h = jnp.dot(h, w, preferred_element_type=jnp.float32) + b
        if i < n_dec - 1:
            h = jnp.maximum(h, 0.0)
    dec_out[...] = h.astype(dec_out.dtype)


# -----------------------------------------------------------------------------
# Wrapper: one pallas_call for the whole forward (batch-gridded)
# -----------------------------------------------------------------------------
@jax.jit
def rqvae_forward(tparams, x):
    enc = tparams["encoder"]                  # padded (w, b) pairs
    dec = tparams["decoder"]
    cbs_log = tparams["codebooks"]            # (L, K, D)   logical (unpadded)
    cbs_pad = tparams["codebooks_padded"]     # (L, K, Dp)
    cbs_t = tparams["codebooks_t"]            # (L, Dp, K)

    B, input_size = x.shape
    L, K, D = cbs_log.shape
    Dp = cbs_pad.shape[-1]
    out_pad = dec[-1][0].shape[1]             # padded decoder output width

    # Batch tile: multiple of 8 sublanes, capped for v7x's 64 MiB VMEM.
    TB = min(_round_up(max(B, 1), 8), 256)
    grid = (pl.cdiv(B, TB),)

    def const_spec(a):
        nd = a.ndim
        return pl.BlockSpec(a.shape, lambda i: (0,) * nd)

    inputs = [x]
    in_specs = [pl.BlockSpec((TB, input_size), lambda i: (i, 0))]
    for w, b in enc:
        inputs += [w, b]
        in_specs += [const_spec(w), const_spec(b)]
    inputs += [cbs_pad, cbs_t]
    in_specs += [const_spec(cbs_pad), const_spec(cbs_t)]
    for w, b in dec:
        inputs += [w, b]
        in_specs += [const_spec(w), const_spec(b)]

    out_shapes = (
        jax.ShapeDtypeStruct((B, out_pad), jnp.float32),   # decoded (padded)
        jax.ShapeDtypeStruct((B, L * D), jnp.float32),     # r slab
        jax.ShapeDtypeStruct((B, L), jnp.int32),           # quantized ids
    )
    out_specs = (
        pl.BlockSpec((TB, out_pad), lambda i: (i, 0)),
        pl.BlockSpec((TB, L * D), lambda i: (i, 0)),
        pl.BlockSpec((TB, L), lambda i: (i, 0)),
    )

    kernel = functools.partial(
        _rqvae_fused_kernel,
        n_enc=len(enc), n_dec=len(dec), n_levels=L, latent_dim=D)

    # VMEM budget: resident params + double-buffered per-block activations.
    param_bytes = sum(int(a.size) * 4 for a in inputs[1:])
    block_io_bytes = 4 * TB * (input_size + out_pad + L * D + L + 2 * Dp)
    vmem_limit = int(min(max(2 * param_bytes + 4 * block_io_bytes + (8 << 20),
                             16 << 20), 64 << 20))

    flops = 0
    for w, _ in list(enc) + list(dec):
        flops += 2 * B * int(w.shape[0]) * int(w.shape[1])
    flops += 4 * B * L * K * Dp                       # cross + one-hot gather
    bytes_accessed = 4 * (int(x.size) + sum(int(a.size) for a in inputs[1:])
                          + B * out_pad + B * L * D + B * L)

    decoded_p, r_slab, quantized = pl.pallas_call(
        kernel,
        grid=grid,
        out_shape=out_shapes,
        in_specs=in_specs,
        out_specs=out_specs,
        compiler_params=pltpu.CompilerParams(
            dimension_semantics=("parallel",),
            vmem_limit_bytes=vmem_limit),
        cost_estimate=pl.CostEstimate(flops=flops, transcendentals=0,
                                      bytes_accessed=bytes_accessed),
    )(*inputs)

    # Cheap post-processing in plain XLA (kept out of the DMA-bound kernel).
    decoded = decoded_p[:, :input_size]                       # drop zero padding
    r = r_slab.reshape(B, L, D)                               # metadata-only
    e = cbs_log[jnp.arange(L)[None, :], quantized]            # (B, L, D) gather
    counts = jnp.sum(jax.nn.one_hot(quantized, K, dtype=jnp.int32), axis=0)
    return decoded, r, e, counts, quantized


# -----------------------------------------------------------------------------
# Parameter construction (deterministic, PyTorch-default-like) + TPU prep
# -----------------------------------------------------------------------------
def _init_linear(key, fan_in, fan_out):
    kw, kb = jax.random.split(key)
    bound = 1.0 / jnp.sqrt(jnp.float32(fan_in))
    w = jax.random.uniform(kw, (fan_in, fan_out), jnp.float32, -bound, bound)
    b = jax.random.uniform(kb, (1, fan_out), jnp.float32, -bound, bound)
    return w, b


def init_rqvae_params(key, input_size, hidden_sizes, latent_size,
                      num_levels, codebook_size):
    keys = jax.random.split(key, 16)
    ki = iter(keys)

    enc_dims = [input_size] + list(hidden_sizes) + [latent_size]
    encoder = [_init_linear(next(ki), a, b)
               for a, b in zip(enc_dims[:-1], enc_dims[1:])]

    dec_dims = [latent_size] + list(reversed(hidden_sizes)) + [input_size]
    decoder = [_init_linear(next(ki), a, b)
               for a, b in zip(dec_dims[:-1], dec_dims[1:])]

    codebooks = jax.random.normal(
        next(ki), (num_levels, codebook_size, latent_size), jnp.float32)
    return {"encoder": encoder, "decoder": decoder, "codebooks": codebooks}


def _pad_mlp(layers, pad_first_in, lane=128):
    """Zero-pad feature dims to multiples of `lane` (mathematically identity)."""
    padded = []
    for idx, (w, b) in enumerate(layers):
        din, dout = w.shape
        din_p = _round_up(din, lane) if (idx > 0 or pad_first_in) else din
        dout_p = _round_up(dout, lane)
        w_p = jnp.zeros((din_p, dout_p), w.dtype).at[:din, :dout].set(w)
        b_p = jnp.zeros((1, dout_p), b.dtype).at[:, :dout].set(b)
        padded.append((w_p, b_p))
    return padded


def prepare_params_for_tpu(params, lane=128):
    """One-time prep: pad to lane multiples and pre-transpose codebooks."""
    cbs = params["codebooks"]                                  # (L, K, D)
    L, K, D = cbs.shape
    Dp = _round_up(D, lane)
    cbs_pad = jnp.zeros((L, K, Dp), cbs.dtype).at[:, :, :D].set(cbs)
    cbs_t = jnp.transpose(cbs_pad, (0, 2, 1))                  # (L, Dp, K)
    return {
        "encoder": _pad_mlp(params["encoder"], pad_first_in=False, lane=lane),
        "decoder": _pad_mlp(params["decoder"], pad_first_in=True, lane=lane),
        "codebooks": cbs,
        "codebooks_padded": cbs_pad,
        "codebooks_t": cbs_t,
    }


# -----------------------------------------------------------------------------
# Pure-JAX reference (same forward semantics) for verification
# -----------------------------------------------------------------------------
def _reference_forward(params, x):
    enc, dec, cbs = params["encoder"], params["decoder"], params["codebooks"]
    h = x
    for i, (w, b) in enumerate(enc):
        h = h @ w + b
        if i < len(enc) - 1:
            h = jnp.maximum(h, 0.0)
    residual = h
    z_hat = jnp.zeros_like(h)
    L, K, D = cbs.shape
    rs, es, idxs, cnts = [], [], [], []
    for l in range(L):
        cb = cbs[l]
        d = jnp.sum((residual[:, None, :] - cb[None, :, :]) ** 2, axis=-1)
        idx = jnp.argmin(d, axis=-1)
        emb = cb[idx]
        rs.append(residual)
        es.append(emb)
        idxs.append(idx.astype(jnp.int32))
        cnts.append(jnp.sum(jax.nn.one_hot(idx, K, dtype=jnp.int32), axis=0))
        z_hat = z_hat + emb
        residual = residual - emb
    h = z_hat
    for i, (w, b) in enumerate(dec):
        h = h @ w + b
        if i < len(dec) - 1:
            h = jnp.maximum(h, 0.0)
    return (h, jnp.stack(rs, 1), jnp.stack(es, 1),
            jnp.stack(cnts, 0), jnp.stack(idxs, 1))


# -----------------------------------------------------------------------------
if __name__ == "__main__":
    # small, forward-consistent shapes
    batch = 8
    input_size = 64
    hidden_sizes = [32, 16]
    latent_size = 8
    num_levels = 3
    codebook_size = 16
    dropout = 0.1  # identity in eval mode

    key = jax.random.PRNGKey(0)
    kx, kp = jax.random.split(key)
    x = jax.random.normal(kx, (batch, input_size), jnp.float32)
    params = init_rqvae_params(
        kp, input_size, hidden_sizes, latent_size, num_levels, codebook_size)
    tparams = prepare_params_for_tpu(params)

    decoded, r, e, counts, quantized = rqvae_forward(tparams, x)
    jax.block_until_ready((decoded, r, e, counts, quantized))

    assert decoded.shape == (batch, input_size)
    assert r.shape == (batch, num_levels, latent_size)
    assert e.shape == (batch, num_levels, latent_size)
    assert counts.shape == (num_levels, codebook_size)
    assert quantized.shape == (batch, num_levels)

    # Verify against a pure-JAX reference of the same forward (logical params).
    d_ref, r_ref, e_ref, c_ref, q_ref = _reference_forward(params, x)
    assert jnp.array_equal(quantized, q_ref), "index mismatch"
    assert jnp.array_equal(counts, c_ref), "count mismatch"
    assert jnp.allclose(decoded, d_ref, rtol=1e-3, atol=1e-3)
    assert jnp.allclose(r, r_ref, rtol=1e-3, atol=1e-3)
    assert jnp.allclose(e, e_ref, rtol=1e-3, atol=1e-3)

    print("KERNEL_OK")
</pallas_src>

<mosaic_0001>
module attributes {stable_mosaic.version = 11 : i64} {
  func.func @_rqvae_fused_kernel(%arg0: i32, %arg1: memref<8x64xf32, #tpu.memory_space<vmem>>, %arg2: memref<64x128xf32, #tpu.memory_space<vmem>>, %arg3: memref<1x128xf32, #tpu.memory_space<vmem>>, %arg4: memref<128x128xf32, #tpu.memory_space<vmem>>, %arg5: memref<1x128xf32, #tpu.memory_space<vmem>>, %arg6: memref<128x128xf32, #tpu.memory_space<vmem>>, %arg7: memref<1x128xf32, #tpu.memory_space<vmem>>, %arg8: memref<3x16x128xf32, #tpu.memory_space<vmem>>, %arg9: memref<3x128x16xf32, #tpu.memory_space<vmem>>, %arg10: memref<128x128xf32, #tpu.memory_space<vmem>>, %arg11: memref<1x128xf32, #tpu.memory_space<vmem>>, %arg12: memref<128x128xf32, #tpu.memory_space<vmem>>, %arg13: memref<1x128xf32, #tpu.memory_space<vmem>>, %arg14: memref<128x128xf32, #tpu.memory_space<vmem>>, %arg15: memref<1x128xf32, #tpu.memory_space<vmem>>, %arg16: memref<8x128xf32, #tpu.memory_space<vmem>>, %arg17: memref<8x24xf32, #tpu.memory_space<vmem>>, %arg18: memref<8x3xi32, #tpu.memory_space<vmem>>) attributes {dimension_semantics = [#tpu.dimension_semantics<parallel>], iteration_bounds = array<i64: 1>, scalar_prefetch = 0 : i64, scratch_operands = 0 : i64, tpu.core_type = #tpu.core_type<tc>, window_params = [{transform_indices = @transform_0, window_bounds = array<i64: 8, 64>}, {pipeline_mode = #tpu.pipeline_mode<synchronous>, transform_indices = @transform_1, window_bounds = array<i64: 64, 128>}, {pipeline_mode = #tpu.pipeline_mode<synchronous>, transform_indices = @transform_2, window_bounds = array<i64: 1, 128>}, {pipeline_mode = #tpu.pipeline_mode<synchronous>, transform_indices = @transform_3, window_bounds = array<i64: 128, 128>}, {pipeline_mode = #tpu.pipeline_mode<synchronous>, transform_indices = @transform_4, window_bounds = array<i64: 1, 128>}, {pipeline_mode = #tpu.pipeline_mode<synchronous>, transform_indices = @transform_5, window_bounds = array<i64: 128, 128>}, {pipeline_mode = #tpu.pipeline_mode<synchronous>, transform_indices = @transform_6, window_bounds = array<i64: 1, 128>}, {pipeline_mode = #tpu.pipeline_mode<synchronous>, transform_indices = @transform_7, window_bounds = array<i64: 3, 16, 128>}, {pipeline_mode = #tpu.pipeline_mode<synchronous>, transform_indices = @transform_8, window_bounds = array<i64: 3, 128, 16>}, {pipeline_mode = #tpu.pipeline_mode<synchronous>, transform_indices = @transform_9, window_bounds = array<i64: 128, 128>}, {pipeline_mode = #tpu.pipeline_mode<synchronous>, transform_indices = @transform_10, window_bounds = array<i64: 1, 128>}, {pipeline_mode = #tpu.pipeline_mode<synchronous>, transform_indices = @transform_11, window_bounds = array<i64: 128, 128>}, {pipeline_mode = #tpu.pipeline_mode<synchronous>, transform_indices = @transform_12, window_bounds = array<i64: 1, 128>}, {pipeline_mode = #tpu.pipeline_mode<synchronous>, transform_indices = @transform_13, window_bounds = array<i64: 128, 128>}, {pipeline_mode = #tpu.pipeline_mode<synchronous>, transform_indices = @transform_14, window_bounds = array<i64: 1, 128>}, {transform_indices = @transform_15, window_bounds = array<i64: 8, 128>}, {transform_indices = @transform_16, window_bounds = array<i64: 8, 24>}, {transform_indices = @transform_17, window_bounds = array<i64: 8, 3>}]} {
    %c0 = arith.constant 0 : index
    %c0_0 = arith.constant 0 : index
    %0 = vector.load %arg1[%c0, %c0_0] : memref<8x64xf32, #tpu.memory_space<vmem>>, vector<8x64xf32>
    %c0_1 = arith.constant 0 : index
    %c0_2 = arith.constant 0 : index
    %1 = vector.load %arg2[%c0_1, %c0_2] : memref<64x128xf32, #tpu.memory_space<vmem>>, vector<64x128xf32>
    %c0_3 = arith.constant 0 : index
    %c0_4 = arith.constant 0 : index
    %2 = vector.load %arg3[%c0_3, %c0_4] : memref<1x128xf32, #tpu.memory_space<vmem>>, vector<1x128xf32>
    %cst = arith.constant dense<0.000000e+00> : vector<8x128xf32>
    %3 = tpu.matmul %0, %1, %cst {dimension_numbers = #tpu.dot_dimension_numbers<[1], [0], [0], [1], [0, 0, 1, 1], [], []>} : vector<8x64xf32>, vector<64x128xf32>, vector<8x128xf32> -> vector<8x128xf32>
    %4 = vector.broadcast %2 : vector<1x128xf32> to vector<8x128xf32>
    %5 = arith.addf %3, %4 : vector<8x128xf32>
    %cst_5 = arith.constant 0.000000e+00 : f32
    %6 = vector.broadcast %cst_5 : f32 to vector<8x128xf32>
    %7 = arith.maximumf %5, %6 : vector<8x128xf32>
    %c0_6 = arith.constant 0 : index
    %c0_7 = arith.constant 0 : index
    %8 = vector.load %arg4[%c0_6, %c0_7] : memref<128x128xf32, #tpu.memory_space<vmem>>, vector<128x128xf32>
    %c0_8 = arith.constant 0 : index
    %c0_9 = arith.constant 0 : index
    %9 = vector.load %arg5[%c0_8, %c0_9] : memref<1x128xf32, #tpu.memory_space<vmem>>, vector<1x128xf32>
    %cst_10 = arith.constant dense<0.000000e+00> : vector<8x128xf32>
    %10 = tpu.matmul %7, %8, %cst_10 {dimension_numbers = #tpu.dot_dimension_numbers<[1], [0], [0], [1], [0, 0, 1, 1], [], []>} : vector<8x128xf32>, vector<128x128xf32>, vector<8x128xf32> -> vector<8x128xf32>
    %11 = vector.broadcast %9 : vector<1x128xf32> to vector<8x128xf32>
    %12 = arith.addf %10, %11 : vector<8x128xf32>
    %cst_11 = arith.constant 0.000000e+00 : f32
    %13 = vector.broadcast %cst_11 : f32 to vector<8x128xf32>
    %14 = arith.maximumf %12, %13 : vector<8x128xf32>
    %c0_12 = arith.constant 0 : index
    %c0_13 = arith.constant 0 : index
    %15 = vector.load %arg6[%c0_12, %c0_13] : memref<128x128xf32, #tpu.memory_space<vmem>>, vector<128x128xf32>
    %c0_14 = arith.constant 0 : index
    %c0_15 = arith.constant 0 : index
    %16 = vector.load %arg7[%c0_14, %c0_15] : memref<1x128xf32, #tpu.memory_space<vmem>>, vector<1x128xf32>
    %cst_16 = arith.constant dense<0.000000e+00> : vector<8x128xf32>
    %17 = tpu.matmul %14, %15, %cst_16 {dimension_numbers = #tpu.dot_dimension_numbers<[1], [0], [0], [1], [0, 0, 1, 1], [], []>} : vector<8x128xf32>, vector<128x128xf32>, vector<8x128xf32> -> vector<8x128xf32>
    %18 = vector.broadcast %16 : vector<1x128xf32> to vector<8x128xf32>
    %19 = arith.addf %17, %18 : vector<8x128xf32>
    %20 = tpu.iota {dimensions = array<i32: 1>} : vector<8x16xi32>
    %cst_17 = arith.constant 0.000000e+00 : f32
    %21 = vector.broadcast %cst_17 : f32 to vector<8x128xf32>
    %c0_18 = arith.constant 0 : index
    %c0_19 = arith.constant 0 : index
    %c0_20 = arith.constant 0 : index
    %22 = vector.load %arg8[%c0_18, %c0_19, %c0_20] : memref<3x16x128xf32, #tpu.memory_space<vmem>>, vector<1x16x128xf32>
    %23 = vector.shape_cast %22 : vector<1x16x128xf32> to vector<16x128xf32>
    %c0_21 = arith.constant 0 : index
    %c0_22 = arith.constant 0 : index
    %c0_23 = arith.constant 0 : index
    %24 = vector.load %arg9[%c0_21, %c0_22, %c0_23] : memref<3x128x16xf32, #tpu.memory_space<vmem>>, vector<1x128x16xf32>
    %25 = vector.shape_cast %24 : vector<1x128x16xf32> to vector<128x16xf32>
    %26 = arith.mulf %25, %25 : vector<128x16xf32>
    %cst_24 = arith.constant dense<0.000000e+00> : vector<16xf32>
    %27 = vector.multi_reduction <add>, %26, %cst_24 [0] : vector<128x16xf32> to vector<16xf32>
    %28 = vector.shape_cast %27 : vector<16xf32> to vector<1x16xf32>
    %cst_25 = arith.constant dense<0.000000e+00> : vector<8x16xf32>
    %29 = tpu.matmul %19, %25, %cst_25 {dimension_numbers = #tpu.dot_dimension_numbers<[1], [0], [0], [1], [0, 0, 1, 1], [], []>} : vector<8x128xf32>, vector<128x16xf32>, vector<8x16xf32> -> vector<8x16xf32>
    %cst_26 = arith.constant 2.000000e+00 : f32
    %30 = vector.broadcast %cst_26 : f32 to vector<8x16xf32>
    %31 = arith.mulf %30, %29 : vector<8x16xf32>
    %32 = vector.broadcast %28 : vector<1x16xf32> to vector<8x16xf32>
    %33 = arith.subf %32, %31 : vector<8x16xf32>
    %cst_27 = arith.constant dense<0x7F800000> : vector<8xf32>
    %34 = vector.multi_reduction <minimumf>, %33, %cst_27 [1] : vector<8x16xf32> to vector<8xf32>
    %35 = vector.shape_cast %34 : vector<8xf32> to vector<8x1xf32>
    %36 = vector.broadcast %35 : vector<8x1xf32> to vector<8x16xf32>
    %37 = arith.cmpf ole, %33, %36 : vector<8x16xf32>
    %c16_i32 = arith.constant 16 : i32
    %38 = vector.broadcast %c16_i32 : i32 to vector<8x16xi32>
    %39 = arith.select %37, %20, %38 : vector<8x16xi1>, vector<8x16xi32>
    %cst_28 = arith.constant dense<2147483647> : vector<8xi32>
    %40 = vector.multi_reduction <minsi>, %39, %cst_28 [1] : vector<8x16xi32> to vector<8xi32>
    %41 = vector.shape_cast %40 : vector<8xi32> to vector<8x1xi32>
    %42 = vector.broadcast %41 : vector<8x1xi32> to vector<8x16xi32>
    %43 = arith.cmpi eq, %20, %42 : vector<8x16xi32>
    %44 = arith.extui %43 : vector<8x16xi1> to vector<8x16xi32>
    %45 = arith.sitofp %44 : vector<8x16xi32> to vector<8x16xf32>
    %cst_29 = arith.constant dense<0.000000e+00> : vector<8x128xf32>
    %46 = tpu.matmul %45, %23, %cst_29 {dimension_numbers = #tpu.dot_dimension_numbers<[1], [0], [0], [1], [0, 0, 1, 1], [], []>} : vector<8x16xf32>, vector<16x128xf32>, vector<8x128xf32> -> vector<8x128xf32>
    %47 = vector.extract_strided_slice %19 {offsets = [0, 0], sizes = [8, 8], strides = [1, 1]} : vector<8x128xf32> to vector<8x8xf32>
    %48 = arith.addf %21, %46 : vector<8x128xf32>
    %49 = arith.subf %19, %46 : vector<8x128xf32>
    %c1 = arith.constant 1 : index
    %c0_30 = arith.constant 0 : index
    %c0_31 = arith.constant 0 : index
    %50 = vector.load %arg8[%c1, %c0_30, %c0_31] : memref<3x16x128xf32, #tpu.memory_space<vmem>>, vector<1x16x128xf32>
    %51 = vector.shape_cast %50 : vector<1x16x128xf32> to vector<16x128xf32>
    %c1_32 = arith.constant 1 : index
    %c0_33 = arith.constant 0 : index
    %c0_34 = arith.constant 0 : index
    %52 = vector.load %arg9[%c1_32, %c0_33, %c0_34] : memref<3x128x16xf32, #tpu.memory_space<vmem>>, vector<1x128x16xf32>
    %53 = vector.shape_cast %52 : vector<1x128x16xf32> to vector<128x16xf32>
    %54 = arith.mulf %53, %53 : vector<128x16xf32>
    %cst_35 = arith.constant dense<0.000000e+00> : vector<16xf32>
    %55 = vector.multi_reduction <add>, %54, %cst_35 [0] : vector<128x16xf32> to vector<16xf32>
    %56 = vector.shape_cast %55 : vector<16xf32> to vector<1x16xf32>
    %cst_36 = arith.constant dense<0.000000e+00> : vector<8x16xf32>
    %57 = tpu.matmul %49, %53, %cst_36 {dimension_numbers = #tpu.dot_dimension_numbers<[1], [0], [0], [1], [0, 0, 1, 1], [], []>} : vector<8x128xf32>, vector<128x16xf32>, vector<8x16xf32> -> vector<8x16xf32>
    %cst_37 = arith.constant 2.000000e+00 : f32
    %58 = vector.broadcast %cst_37 : f32 to vector<8x16xf32>
    %59 = arith.mulf %58, %57 : vector<8x16xf32>
    %60 = vector.broadcast %56 : vector<1x16xf32> to vector<8x16xf32>
    %61 = arith.subf %60, %59 : vector<8x16xf32>
    %cst_38 = arith.constant dense<0x7F800000> : vector<8xf32>
    %62 = vector.multi_reduction <minimumf>, %61, %cst_38 [1] : vector<8x16xf32> to vector<8xf32>
    %63 = vector.shape_cast %62 : vector<8xf32> to vector<8x1xf32>
    %64 = vector.broadcast %63 : vector<8x1xf32> to vector<8x16xf32>
    %65 = arith.cmpf ole, %61, %64 : vector<8x16xf32>
    %c16_i32_39 = arith.constant 16 : i32
    %66 = vector.broadcast %c16_i32_39 : i32 to vector<8x16xi32>
    %67 = arith.select %65, %20, %66 : vector<8x16xi1>, vector<8x16xi32>
    %cst_40 = arith.constant dense<2147483647> : vector<8xi32>
    %68 = vector.multi_reduction <minsi>, %67, %cst_40 [1] : vector<8x16xi32> to vector<8xi32>
    %69 = vector.shape_cast %68 : vector<8xi32> to vector<8x1xi32>
    %70 = vector.broadcast %69 : vector<8x1xi32> to vector<8x16xi32>
    %71 = arith.cmpi eq, %20, %70 : vector<8x16xi32>
    %72 = arith.extui %71 : vector<8x16xi1> to vector<8x16xi32>
    %73 = arith.sitofp %72 : vector<8x16xi32> to vector<8x16xf32>
    %cst_41 = arith.constant dense<0.000000e+00> : vector<8x128xf32>
    %74 = tpu.matmul %73, %51, %cst_41 {dimension_numbers = #tpu.dot_dimension_numbers<[1], [0], [0], [1], [0, 0, 1, 1], [], []>} : vector<8x16xf32>, vector<16x128xf32>, vector<8x128xf32> -> vector<8x128xf32>
    %75 = vector.extract_strided_slice %49 {offsets = [0, 0], sizes = [8, 8], strides = [1, 1]} : vector<8x128xf32> to vector<8x8xf32>
    %76 = arith.addf %48, %74 : vector<8x128xf32>
    %77 = arith.subf %49, %74 : vector<8x128xf32>
    %c2 = arith.constant 2 : index
    %c0_42 = arith.constant 0 : index
    %c0_43 = arith.constant 0 : index
    %78 = vector.load %arg8[%c2, %c0_42, %c0_43] : memref<3x16x128xf32, #tpu.memory_space<vmem>>, vector<1x16x128xf32>
    %79 = vector.shape_cast %78 : vector<1x16x128xf32> to vector<16x128xf32>
    %c2_44 = arith.constant 2 : index
    %c0_45 = arith.constant 0 : index
    %c0_46 = arith.constant 0 : index
    %80 = vector.load %arg9[%c2_44, %c0_45, %c0_46] : memref<3x128x16xf32, #tpu.memory_space<vmem>>, vector<1x128x16xf32>
    %81 = vector.shape_cast %80 : vector<1x128x16xf32> to vector<128x16xf32>
    %82 = arith.mulf %81, %81 : vector<128x16xf32>
    %cst_47 = arith.constant dense<0.000000e+00> : vector<16xf32>
    %83 = vector.multi_reduction <add>, %82, %cst_47 [0] : vector<128x16xf32> to vector<16xf32>
    %84 = vector.shape_cast %83 : vector<16xf32> to vector<1x16xf32>
    %cst_48 = arith.constant dense<0.000000e+00> : vector<8x16xf32>
    %85 = tpu.matmul %77, %81, %cst_48 {dimension_numbers = #tpu.dot_dimension_numbers<[1], [0], [0], [1], [0, 0, 1, 1], [], []>} : vector<8x128xf32>, vector<128x16xf32>, vector<8x16xf32> -> vector<8x16xf32>
    %cst_49 = arith.constant 2.000000e+00 : f32
    %86 = vector.broadcast %cst_49 : f32 to vector<8x16xf32>
    %87 = arith.mulf %86, %85 : vector<8x16xf32>
    %88 = vector.broadcast %84 : vector<1x16xf32> to vector<8x16xf32>
    %89 = arith.subf %88, %87 : vector<8x16xf32>
    %cst_50 = arith.constant dense<0x7F800000> : vector<8xf32>
    %90 = vector.multi_reduction <minimumf>, %89, %cst_50 [1] : vector<8x16xf32> to vector<8xf32>
    %91 = vector.shape_cast %90 : vector<8xf32> to vector<8x1xf32>
    %92 = vector.broadcast %91 : vector<8x1xf32> to vector<8x16xf32>
    %93 = arith.cmpf ole, %89, %92 : vector<8x16xf32>
    %c16_i32_51 = arith.constant 16 : i32
    %94 = vector.broadcast %c16_i32_51 : i32 to vector<8x16xi32>
    %95 = arith.select %93, %20, %94 : vector<8x16xi1>, vector<8x16xi32>
    %cst_52 = arith.constant dense<2147483647> : vector<8xi32>
    %96 = vector.multi_reduction <minsi>, %95, %cst_52 [1] : vector<8x16xi32> to vector<8xi32>
    %97 = vector.shape_cast %96 : vector<8xi32> to vector<8x1xi32>
    %98 = vector.broadcast %97 : vector<8x1xi32> to vector<8x16xi32>
    %99 = arith.cmpi eq, %20, %98 : vector<8x16xi32>
    %100 = arith.extui %99 : vector<8x16xi1> to vector<8x16xi32>
    %101 = arith.sitofp %100 : vector<8x16xi32> to vector<8x16xf32>
    %cst_53 = arith.constant dense<0.000000e+00> : vector<8x128xf32>
    %102 = tpu.matmul %101, %79, %cst_53 {dimension_numbers = #tpu.dot_dimension_numbers<[1], [0], [0], [1], [0, 0, 1, 1], [], []>} : vector<8x16xf32>, vector<16x128xf32>, vector<8x128xf32> -> vector<8x128xf32>
    %103 = vector.extract_strided_slice %77 {offsets = [0, 0], sizes = [8, 8], strides = [1, 1]} : vector<8x128xf32> to vector<8x8xf32>
    %104 = arith.addf %76, %102 : vector<8x128xf32>
    %105 = tpu.concatenate %47, %75, %103 in 1 : vector<8x8xf32>, vector<8x8xf32>, vector<8x8xf32> -> vector<8x24xf32>
    %c0_54 = arith.constant 0 : index
    %c0_55 = arith.constant 0 : index
    %106 = vector.load %arg17[%c0_54, %c0_55] : memref<8x24xf32, #tpu.memory_space<vmem>>, vector<8x24xf32>
    tpu.vector_store %arg17[%c0_54, %c0_55], %105 {strides = array<i32>} : memref<8x24xf32, #tpu.memory_space<vmem>>, vector<8x24xf32>,
    %107 = tpu.concatenate %41, %69, %97 in 1 : vector<8x1xi32>, vector<8x1xi32>, vector<8x1xi32> -> vector<8x3xi32>
    %c0_56 = arith.constant 0 : index
    %c0_57 = arith.constant 0 : index
    %108 = vector.load %arg18[%c0_56, %c0_57] : memref<8x3xi32, #tpu.memory_space<vmem>>, vector<8x3xi32>
    tpu.vector_store %arg18[%c0_56, %c0_57], %107 {strides = array<i32>} : memref<8x3xi32, #tpu.memory_space<vmem>>, vector<8x3xi32>,
    %c0_58 = arith.constant 0 : index
    %c0_59 = arith.constant 0 : index
    %109 = vector.load %arg10[%c0_58, %c0_59] : memref<128x128xf32, #tpu.memory_space<vmem>>, vector<128x128xf32>
    %c0_60 = arith.constant 0 : index
    %c0_61 = arith.constant 0 : index
    %110 = vector.load %arg11[%c0_60, %c0_61] : memref<1x128xf32, #tpu.memory_space<vmem>>, vector<1x128xf32>
    %cst_62 = arith.constant dense<0.000000e+00> : vector<8x128xf32>
    %111 = tpu.matmul %104, %109, %cst_62 {dimension_numbers = #tpu.dot_dimension_numbers<[1], [0], [0], [1], [0, 0, 1, 1], [], []>} : vector<8x128xf32>, vector<128x128xf32>, vector<8x128xf32> -> vector<8x128xf32>
    %112 = vector.broadcast %110 : vector<1x128xf32> to vector<8x128xf32>
    %113 = arith.addf %111, %112 : vector<8x128xf32>
    %cst_63 = arith.constant 0.000000e+00 : f32
    %114 = vector.broadcast %cst_63 : f32 to vector<8x128xf32>
    %115 = arith.maximumf %113, %114 : vector<8x128xf32>
    %c0_64 = arith.constant 0 : index
    %c0_65 = arith.constant 0 : index
    %116 = vector.load %arg12[%c0_64, %c0_65] : memref<128x128xf32, #tpu.memory_space<vmem>>, vector<128x128xf32>
    %c0_66 = arith.constant 0 : index
    %c0_67 = arith.constant 0 : index
    %117 = vector.load %arg13[%c0_66, %c0_67] : memref<1x128xf32, #tpu.memory_space<vmem>>, vector<1x128xf32>
    %cst_68 = arith.constant dense<0.000000e+00> : vector<8x128xf32>
    %118 = tpu.matmul %115, %116, %cst_68 {dimension_numbers = #tpu.dot_dimension_numbers<[1], [0], [0], [1], [0, 0, 1, 1], [], []>} : vector<8x128xf32>, vector<128x128xf32>, vector<8x128xf32> -> vector<8x128xf32>
    %119 = vector.broadcast %117 : vector<1x128xf32> to vector<8x128xf32>
    %120 = arith.addf %118, %119 : vector<8x128xf32>
    %cst_69 = arith.constant 0.000000e+00 : f32
    %121 = vector.broadcast %cst_69 : f32 to vector<8x128xf32>
    %122 = arith.maximumf %120, %121 : vector<8x128xf32>
    %c0_70 = arith.constant 0 : index
    %c0_71 = arith.constant 0 : index
    %123 = vector.load %arg14[%c0_70, %c0_71] : memref<128x128xf32, #tpu.memory_space<vmem>>, vector<128x128xf32>
    %c0_72 = arith.constant 0 : index
    %c0_73 = arith.constant 0 : index
    %124 = vector.load %arg15[%c0_72, %c0_73] : memref<1x128xf32, #tpu.memory_space<vmem>>, vector<1x128xf32>
    %cst_74 = arith.constant dense<0.000000e+00> : vector<8x128xf32>
    %125 = tpu.matmul %122, %123, %cst_74 {dimension_numbers = #tpu.dot_dimension_numbers<[1], [0], [0], [1], [0, 0, 1, 1], [], []>} : vector<8x128xf32>, vector<128x128xf32>, vector<8x128xf32> -> vector<8x128xf32>
    %126 = vector.broadcast %124 : vector<1x128xf32> to vector<8x128xf32>
    %127 = arith.addf %125, %126 : vector<8x128xf32>
    %c0_75 = arith.constant 0 : index
    %c0_76 = arith.constant 0 : index
    %128 = vector.load %arg16[%c0_75, %c0_76] : memref<8x128xf32, #tpu.memory_space<vmem>>, vector<8x128xf32>
    tpu.vector_store %arg16[%c0_75, %c0_76], %127 {strides = array<i32>} : memref<8x128xf32, #tpu.memory_space<vmem>>, vector<8x128xf32>,
    return
  }
  func.func @transform_0(%arg0: i32) -> (i32, i32) {
    %c0_i32 = arith.constant 0 : i32
    %c0_i32_0 = arith.constant 0 : i32
    return %arg0, %c0_i32 : i32, i32
  }
  func.func @transform_1(%arg0: i32) -> (i32, i32) {
    %c0_i32 = arith.constant 0 : i32
    %c0_i32_0 = arith.constant 0 : i32
    %c0_i32_1 = arith.constant 0 : i32
    return %c0_i32, %c0_i32_0 : i32, i32
  }
  func.func @transform_2(%arg0: i32) -> (i32, i32) {
    %c0_i32 = arith.constant 0 : i32
    %c0_i32_0 = arith.constant 0 : i32
    %c0_i32_1 = arith.constant 0 : i32
    return %c0_i32, %c0_i32_0 : i32, i32
  }
  func.func @transform_3(%arg0: i32) -> (i32, i32) {
    %c0_i32 = arith.constant 0 : i32
    %c0_i32_0 = arith.constant 0 : i32
    %c0_i32_1 = arith.constant 0 : i32
    return %c0_i32, %c0_i32_0 : i32, i32
  }
  func.func @transform_4(%arg0: i32) -> (i32, i32) {
    %c0_i32 = arith.constant 0 : i32
    %c0_i32_0 = arith.constant 0 : i32
    %c0_i32_1 = arith.constant 0 : i32
    return %c0_i32, %c0_i32_0 : i32, i32
  }
  func.func @transform_5(%arg0: i32) -> (i32, i32) {
    %c0_i32 = arith.constant 0 : i32
    %c0_i32_0 = arith.constant 0 : i32
    %c0_i32_1 = arith.constant 0 : i32
    return %c0_i32, %c0_i32_0 : i32, i32
  }
  func.func @transform_6(%arg0: i32) -> (i32, i32) {
    %c0_i32 = arith.constant 0 : i32
    %c0_i32_0 = arith.constant 0 : i32
    %c0_i32_1 = arith.constant 0 : i32
    return %c0_i32, %c0_i32_0 : i32, i32
  }
  func.func @transform_7(%arg0: i32) -> (i32, i32, i32) {
    %c0_i32 = arith.constant 0 : i32
    %c0_i32_0 = arith.constant 0 : i32
    %c0_i32_1 = arith.constant 0 : i32
    %c0_i32_2 = arith.constant 0 : i32
    return %c0_i32, %c0_i32_0, %c0_i32_1 : i32, i32, i32
  }
  func.func @transform_8(%arg0: i32) -> (i32, i32, i32) {
    %c0_i32 = arith.constant 0 : i32
    %c0_i32_0 = arith.constant 0 : i32
    %c0_i32_1 = arith.constant 0 : i32
    %c0_i32_2 = arith.constant 0 : i32
    return %c0_i32, %c0_i32_0, %c0_i32_1 : i32, i32, i32
  }
  func.func @transform_9(%arg0: i32) -> (i32, i32) {
    %c0_i32 = arith.constant 0 : i32
    %c0_i32_0 = arith.constant 0 : i32
    %c0_i32_1 = arith.constant 0 : i32
    return %c0_i32, %c0_i32_0 : i32, i32
  }
  func.func @transform_10(%arg0: i32) -> (i32, i32) {
    %c0_i32 = arith.constant 0 : i32
    %c0_i32_0 = arith.constant 0 : i32
    %c0_i32_1 = arith.constant 0 : i32
    return %c0_i32, %c0_i32_0 : i32, i32
  }
  func.func @transform_11(%arg0: i32) -> (i32, i32) {
    %c0_i32 = arith.constant 0 : i32
    %c0_i32_0 = arith.constant 0 : i32
    %c0_i32_1 = arith.constant 0 : i32
    return %c0_i32, %c0_i32_0 : i32, i32
  }
  func.func @transform_12(%arg0: i32) -> (i32, i32) {
    %c0_i32 = arith.constant 0 : i32
    %c0_i32_0 = arith.constant 0 : i32
    %c0_i32_1 = arith.constant 0 : i32
    return %c0_i32, %c0_i32_0 : i32, i32
  }
  func.func @transform_13(%arg0: i32) -> (i32, i32) {
    %c0_i32 = arith.constant 0 : i32
    %c0_i32_0 = arith.constant 0 : i32
    %c0_i32_1 = arith.constant 0 : i32
    return %c0_i32, %c0_i32_0 : i32, i32
  }
  func.func @transform_14(%arg0: i32) -> (i32, i32) {
    %c0_i32 = arith.constant 0 : i32
    %c0_i32_0 = arith.constant 0 : i32
    %c0_i32_1 = arith.constant 0 : i32
    return %c0_i32, %c0_i32_0 : i32, i32
  }
  func.func @transform_15(%arg0: i32) -> (i32, i32) {
    %c0_i32 = arith.constant 0 : i32
    %c0_i32_0 = arith.constant 0 : i32
    return %arg0, %c0_i32 : i32, i32
  }
  func.func @transform_16(%arg0: i32) -> (i32, i32) {
    %c0_i32 = arith.constant 0 : i32
    %c0_i32_0 = arith.constant 0 : i32
    return %arg0, %c0_i32 : i32, i32
  }
  func.func @transform_17(%arg0: i32) -> (i32, i32) {
    %c0_i32 = arith.constant 0 : i32
    %c0_i32_0 = arith.constant 0 : i32
    return %arg0, %c0_i32 : i32, i32
  }
}

</mosaic_0001>

<llo_original>
// kernel: rqvae_forward.1
$region0: #{rqvae_forward.1}
  #allocation0 [shape = 'u32[]', space=smem, size = 0x4, offset = 0x4, fixed_abs, tag = 'smem constant byte address 0x4 - core index']
  #allocation1 [shape = 'u32[144,128]{1,0:T(1,128)}', space=vmem, size = 0x12000, scoped, tag = 'internal scratch']
  %s0 = inlined_call_operand.hbm [shape: f32[8,64], index: 0, kind: input, shape index: {}]
  %s1 = inlined_call_operand.vmem [shape: f32[64,128], index: 1, kind: input, shape index: {}]
  %s2 = inlined_call_operand.vmem [shape: f32[1,128], index: 2, kind: input, shape index: {}]
  %s3 = inlined_call_operand.vmem [shape: f32[128,128], index: 3, kind: input, shape index: {}]
  %s4 = inlined_call_operand.vmem [shape: f32[1,128], index: 4, kind: input, shape index: {}]
  %s5 = inlined_call_operand.vmem [shape: f32[128,128], index: 5, kind: input, shape index: {}]
  %s6 = inlined_call_operand.vmem [shape: f32[1,128], index: 6, kind: input, shape index: {}]
  %s7 = inlined_call_operand.hbm [shape: f32[3,16,128], index: 7, kind: input, shape index: {}]
  %s8 = inlined_call_operand.vmem [shape: f32[3,128,16], index: 8, kind: input, shape index: {}]
  %s9 = inlined_call_operand.vmem [shape: f32[128,128], index: 9, kind: input, shape index: {}]
  %s10 = inlined_call_operand.vmem [shape: f32[1,128], index: 10, kind: input, shape index: {}]
  %s11 = inlined_call_operand.hbm [shape: f32[128,128], index: 11, kind: input, shape index: {}]
  %s12 = inlined_call_operand.vmem [shape: f32[1,128], index: 12, kind: input, shape index: {}]
  %s13 = inlined_call_operand.hbm [shape: f32[128,128], index: 13, kind: input, shape index: {}]
  %s14 = inlined_call_operand.vmem [shape: f32[1,128], index: 14, kind: input, shape index: {}]
  %s15 = inlined_call_operand.hbm [shape: f32[8,128], index: 15, kind: output, shape index: {0}]
  %s16 = inlined_call_operand.vmem [shape: f32[8,24], index: 16, kind: output, shape index: {1}]
  %s17 = inlined_call_operand.vmem [shape: s32[8,3], index: 17, kind: output, shape index: {2}]
  %18 = xla_tuple %s15, %s16, %s17
  %s19 = sld [smem:[#allocation0]]
  $region102: #{rqvae_forward.1} parent=0
    _
  %s21 = ssub.s32 1, %s19
  %s22 = scalar_select 0, %s21, %s19
  $region1: #{rqvae_forward.1} parent=0
    #allocation2 [shape = 'u8[4096]{0}', space=vmem, size = 0x1000, scoped, tag = 'input window, operand 0, single buffered']
    #allocation3 [shape = 's32[1]{0}', space=sflag, size = 0x4, scoped, tag = 'scoped memory for rqvae_forward.1']
    #allocation4 [shape = 's32[1]{0}', space=sflag, size = 0x4, scoped, tag = 'scoped memory for rqvae_forward.1']
    #allocation5 [shape = 'u8[24576]{0}', space=vmem, size = 0x6000, scoped, tag = 'input window, operand 7, single buffered']
    #allocation6 [shape = 's32[1]{0}', space=sflag, size = 0x4, scoped, tag = 'scoped memory for rqvae_forward.1']
    #allocation7 [shape = 'u8[65536]{0}', space=vmem, size = 0x10000, scoped, tag = 'input window, operand 11, single buffered']
    #allocation8 [shape = 'u8[65536]{0}', space=vmem, size = 0x10000, scoped, tag = 'input window, operand 13, single buffered']
    #allocation9 [shape = 's32[1]{0}', space=sflag, size = 0x4, scoped, tag = 'scoped memory for rqvae_forward.1']
    #allocation10 [shape = 'u8[4096]{0}', space=vmem, size = 0x1000, scoped, tag = 'output window, operand 0, single buffered']
    %23 = vsyncpa [#allocation3], 0
    %24 = vsyncpa [#allocation6], 0
    %25 = vsyncpa [#allocation9], 0
    %26 = vsyncpa [#allocation4], 0
    // Predicated region
    $region2: #{rqvae_forward.1} parent=1 // pred_check
      _
    $region3: #{rqvae_forward.1} parent=1 // pred_check_branch
      %28 = sbr.rel (0) target = $region5
    $region4: #{rqvae_forward.1} parent=1 // pred_region
      %s30 = ssub.s32 128, 128
      %31 = vsyncadd [#allocation3], %s30
      %s33 = sshll.u32 [#allocation2], 4
      %s34 = int_to_ptr.vmem [resolvable:$true] %s33
      %36 = dma.hbm_to_vmem [thread:$0]  %s0, 128, %s34, [#allocation3]
    $region5: #{rqvae_forward.1} parent=1 // pred_fallthru
      _
    // Predicated region
    $region6: #{rqvae_forward.1} parent=1 // pred_check
      _
    $region7: #{rqvae_forward.1} parent=1 // pred_check_branch
      %38 = sbr.rel (0) target = $region9
    $region8: #{rqvae_forward.1} parent=1 // pred_region
      _
    $region9: #{rqvae_forward.1} parent=1 // pred_fallthru
      _
    // Predicated region
    $region10: #{rqvae_forward.1} parent=1 // pred_check
      _
    $region11: #{rqvae_forward.1} parent=1 // pred_check_branch
      %40 = sbr.rel (0) target = $region13
    $region12: #{rqvae_forward.1} parent=1 // pred_region
      _
    $region13: #{rqvae_forward.1} parent=1 // pred_fallthru
      _
    // Predicated region
    $region14: #{rqvae_forward.1} parent=1 // pred_check
      _
    $region15: #{rqvae_forward.1} parent=1 // pred_check_branch
      %42 = sbr.rel (0) target = $region17
    $region16: #{rqvae_forward.1} parent=1 // pred_region
      _
    $region17: #{rqvae_forward.1} parent=1 // pred_fallthru
      _
    // Predicated region
    $region18: #{rqvae_forward.1} parent=1 // pred_check
      _
    $region19: #{rqvae_forward.1} parent=1 // pred_check_branch
      %44 = sbr.rel (0) target = $region21
    $region20: #{rqvae_forward.1} parent=1 // pred_region
      _
    $region21: #{rqvae_forward.1} parent=1 // pred_fallthru
      _
    // Predicated region
    $region22: #{rqvae_forward.1} parent=1 // pred_check
      _
    $region23: #{rqvae_forward.1} parent=1 // pred_check_branch
      %46 = sbr.rel (0) target = $region25
    $region24: #{rqvae_forward.1} parent=1 // pred_region
      _
    $region25: #{rqvae_forward.1} parent=1 // pred_fallthru
      _
    // Predicated region
    $region26: #{rqvae_forward.1} parent=1 // pred_check
      _
    $region27: #{rqvae_forward.1} parent=1 // pred_check_branch
      %48 = sbr.rel (0) target = $region29
    $region28: #{rqvae_forward.1} parent=1 // pred_region
      _
    $region29: #{rqvae_forward.1} parent=1 // pred_fallthru
      _
    // Predicated region
    $region30: #{rqvae_forward.1} parent=1 // pred_check
      _
    $region31: #{rqvae_forward.1} parent=1 // pred_check_branch
      %50 = sbr.rel (0) target = $region33
    $region32: #{rqvae_forward.1} parent=1 // pred_region
      %s52 = ssub.s32 768, 768
      %53 = vsyncadd [#allocation6], %s52
      %s54 = sshll.u32 [#allocation5], 4
      %s55 = int_to_ptr.vmem [resolvable:$true] %s54
      %60 = dma.hbm_to_vmem [thread:$0]  %s7, 768, %s55, [#allocation6], 128, 128, 8
    $region33: #{rqvae_forward.1} parent=1 // pred_fallthru
      _
    // Predicated region
    $region34: #{rqvae_forward.1} parent=1 // pred_check
      _
    $region35: #{rqvae_forward.1} parent=1 // pred_check_branch
      %62 = sbr.rel (0) target = $region37
    $region36: #{rqvae_forward.1} parent=1 // pred_region
      _
    $region37: #{rqvae_forward.1} parent=1 // pred_fallthru
      _
    // Predicated region
    $region38: #{rqvae_forward.1} parent=1 // pred_check
      _
    $region39: #{rqvae_forward.1} parent=1 // pred_check_branch
      %64 = sbr.rel (0) target = $region41
    $region40: #{rqvae_forward.1} parent=1 // pred_region
      _
    $region41: #{rqvae_forward.1} parent=1 // pred_fallthru
      _
    // Predicated region
    $region42: #{rqvae_forward.1} parent=1 // pred_check
      _
    $region43: #{rqvae_forward.1} parent=1 // pred_check_branch
      %66 = sbr.rel (0) target = $region45
    $region44: #{rqvae_forward.1} parent=1 // pred_region
      _
    $region45: #{rqvae_forward.1} parent=1 // pred_fallthru
      _
    // Predicated region
    $region46: #{rqvae_forward.1} parent=1 // pred_check
      _
    $region47: #{rqvae_forward.1} parent=1 // pred_check_branch
      %68 = sbr.rel (0) target = $region49
    $region48: #{rqvae_forward.1} parent=1 // pred_region
      %s70 = ssub.s32 2048, 2048
      %71 = vsyncadd [#allocation6], %s70
      %s72 = sshll.u32 [#allocation7], 4
      %s73 = int_to_ptr.vmem [resolvable:$true] %s72
      %78 = dma.hbm_to_vmem [thread:$0]  %s11, 2048, %s73, [#allocation6], 128, 128, 8
    $region49: #{rqvae_forward.1} parent=1 // pred_fallthru
      _
    // Predicated region
    $region50: #{rqvae_forward.1} parent=1 // pred_check
      _
    $region51: #{rqvae_forward.1} parent=1 // pred_check_branch
      %80 = sbr.rel (0) target = $region53
    $region52: #{rqvae_forward.1} parent=1 // pred_region
      _
    $region53: #{rqvae_forward.1} parent=1 // pred_fallthru
      _
    // Predicated region
    $region54: #{rqvae_forward.1} parent=1 // pred_check
      _
    $region55: #{rqvae_forward.1} parent=1 // pred_check_branch
      %82 = sbr.rel (0) target = $region57
    $region56: #{rqvae_forward.1} parent=1 // pred_region
      %s84 = ssub.s32 2048, 2048
      %85 = vsyncadd [#allocation9], %s84
      %s86 = sshll.u32 [#allocation8], 4
      %s87 = int_to_ptr.vmem [resolvable:$true] %s86
      %92 = dma.hbm_to_vmem [thread:$0]  %s13, 2048, %s87, [#allocation9], 128, 128, 8
    $region57: #{rqvae_forward.1} parent=1 // pred_fallthru
      _
    // Predicated region
    $region58: #{rqvae_forward.1} parent=1 // pred_check
      _
    $region59: #{rqvae_forward.1} parent=1 // pred_check_branch
      %94 = sbr.rel (0) target = $region61
    $region60: #{rqvae_forward.1} parent=1 // pred_region
      _
    $region61: #{rqvae_forward.1} parent=1 // pred_fallthru
      _
    // Predicated region
    $region62: #{rqvae_forward.1} parent=1 // pred_check
      _
    $region63: #{rqvae_forward.1} parent=1 // pred_check_branch
      %96 = sbr.rel (0) target = $region65
    $region64: #{rqvae_forward.1} parent=1 // pred_region
      %97 = dma.done [#allocation3], 128
    $region65: #{rqvae_forward.1} parent=1 // pred_fallthru
      _
    // Predicated region
    $region66: #{rqvae_forward.1} parent=1 // pred_check
      _
    $region67: #{rqvae_forward.1} parent=1 // pred_check_branch
      %99 = sbr.rel (0) target = $region69
    $region68: #{rqvae_forward.1} parent=1 // pred_region
      %100 = dma.done [#allocation6], 768
    $region69: #{rqvae_forward.1} parent=1 // pred_fallthru
      _
    // Predicated region
    $region70: #{rqvae_forward.1} parent=1 // pred_check
      _
    $region71: #{rqvae_forward.1} parent=1 // pred_check_branch
      %102 = sbr.rel (0) target = $region73
    $region72: #{rqvae_forward.1} parent=1 // pred_region
      %103 = dma.done [#allocation6], 2048
    $region73: #{rqvae_forward.1} parent=1 // pred_fallthru
      _
    // Predicated region
    $region74: #{rqvae_forward.1} parent=1 // pred_check
      _
    $region75: #{rqvae_forward.1} parent=1 // pred_check_branch
      %105 = sbr.rel (0) target = $region77
    $region76: #{rqvae_forward.1} parent=1 // pred_region
      %106 = dma.done [#allocation9], 2048
    $region77: #{rqvae_forward.1} parent=1 // pred_fallthru
      _
    %v107 = vld [vmem:[#allocation2] sm:$0xff]
    %v108 = vld [vmem:[%s1] sm:$0xff]
    %v109 = vld [vmem:[%s1 + $0x8] sm:$0xff]
    %v110 = vld [vmem:[%s1 + $0x10] sm:$0xff]
    %v111 = vld [vmem:[%s1 + $0x18] sm:$0xff]
    %v112 = vld [vmem:[%s1 + $0x20] sm:$0xff]
    %v113 = vld [vmem:[%s1 + $0x28] sm:$0xff]
    %v114 = vld [vmem:[%s1 + $0x30] sm:$0xff]
    %v115 = vld [vmem:[%s1 + $0x38] sm:$0xff]
    %v116 = vld [vmem:[%s2] sm:$0x1]
    %v118 = vlaneseq
    %v119 = vshrl.u32 %v118, 7
    %v120 = vsub.s32 0, %v119
    %v121 = vrot.slane %v116, %v120
    %vm123 = vcmask 523264
    %v125 = vsel %vm123, %v107, 0
    %127 = vmatprep.subr.mxu0 0.0
    %128 = vmatpush1.msra.mxu0 %v108
    %129 = vmatprep.subr.mxu0 0.0
    %130 = vmatpush1.msra.mxu0 %v109
    %131 = vmatprep.subr.mxu0 0.0
    %132 = vmatpush1.msra.mxu0 %v110
    %133 = vmatprep.subr.mxu0 0.0
    %134 = vmatpush1.msra.mxu0 %v111
    %135 = vmatprep.subr.mxu0 0.0
    %136 = vmatpush1.msra.mxu0 %v112
    %137 = vmatprep.subr.mxu0 0.0
    %138 = vmatpush1.msra.mxu0 %v113
    %139 = vmatprep.subr.mxu0 0.0
    %140 = vmatpush1.msra.mxu0 %v114
    %141 = vmatprep.subr.mxu0 0.0
    %142 = vmatpush1.msra.mxu0 %v115
    %143 = vmatprep.subr.mxu0 0.0
    %144 = vmatpush1.msra.mxu0 0.0
    %145 = vmatprep.subr.mxu0 0.0
    %146 = vmatpush1.msra.mxu0 0.0
    %147 = vmatprep.subr.mxu0 0.0
    %148 = vmatpush1.msra.mxu0 0.0
    %149 = vmatprep.subr.mxu0 0.0
    %150 = vmatpush1.msra.mxu0 0.0
    %151 = vmatprep.subr.mxu0 0.0
    %152 = vmatpush1.msra.mxu0 0.0
    %153 = vmatprep.subr.mxu0 0.0
    %154 = vmatpush1.msra.mxu0 0.0
    %155 = vmatprep.subr.mxu0 0.0
    %156 = vmatpush1.msra.mxu0 0.0
    %157 = vmatprep.subr.mxu0 0.0
    %158 = vmatpush1.msra.mxu0 0.0
    %159 = vmatprep.subr.mxu0 0.0
    %160 = vmatpush1.msra.mxu0 0.0
    %161 = vmatprep.subr.mxu0 0.0
    %162 = vmatpush1.msra.mxu0 0.0
    %163 = vmatprep.subr.mxu0 0.0
    %164 = vmatpush1.msra.mxu0 0.0
    %165 = vmatprep.subr.mxu0 0.0
    %166 = vmatpush1.msra.mxu0 0.0
    %167 = vmatprep.subr.mxu0 0.0
    %168 = vmatpush1.msra.mxu0 0.0
    %169 = vmatprep.subr.mxu0 0.0
    %170 = vmatpush1.msra.mxu0 0.0
    %171 = vmatprep.subr.mxu0 0.0
    %172 = vmatpush1.msra.mxu0 0.0
    %173 = vmatprep.subr.mxu0 0.0
    %174 = vmatpush1.msra.mxu0 0.0
    %175 = vmatprep.subr.mxu0 0.0
    %176 = vmatpush1.msra.mxu0 0.0
    %177 = vmatprep.subr.mxu0 0.0
    %178 = vmatpush1.msra.mxu0 0.0
    %179 = vmatprep.subr.mxu0 0.0
    %180 = vmatpush1.msra.mxu0 0.0
    %181 = vmatprep.subr.mxu0 0.0
    %182 = vmatpush1.msra.mxu0 0.0
    %183 = vmatprep.subr.mxu0 0.0
    %184 = vmatpush1.msra.mxu0 0.0
    %185 = vmatprep.subr.mxu0 0.0
    %186 = vmatpush1.msra.mxu0 0.0
    %187 = vmatprep.subr.mxu0 0.0
    %188 = vmatpush1.msra.mxu0 0.0
    %189 = vmatprep.subr.mxu0 0.0
    %190 = vmatpush1.msra.mxu0 0.0
    %191 = vmatprep.mubr.f32.mxu0 0.0
    %192 = vmatmul.mubr.f32.gmra.mrb[0].mxu0 %v125
    %v193 = vpop.f32.mrb[0].mxu0
    %v194 = vadd.f32 %v121, %v193
    %v195 = vpop.f32.mrb[0].mxu0
    %196 = vdwg.mxu0
    %v197 = vmax.f32 %v194, 0.0
    %v198 = vld [vmem:[%s3] sm:$0xff]
    %v199 = vld [vmem:[%s3 + $0x8] sm:$0xff]
    %v200 = vld [vmem:[%s3 + $0x10] sm:$0xff]
    %v201 = vld [vmem:[%s3 + $0x18] sm:$0xff]
    %v202 = vld [vmem:[%s3 + $0x20] sm:$0xff]
    %v203 = vld [vmem:[%s3 + $0x28] sm:$0xff]
    %v204 = vld [vmem:[%s3 + $0x30] sm:$0xff]
    %v205 = vld [vmem:[%s3 + $0x38] sm:$0xff]
    %v206 = vld [vmem:[%s3 + $0x40] sm:$0xff]
    %v207 = vld [vmem:[%s3 + $0x48] sm:$0xff]
    %v208 = vld [vmem:[%s3 + $0x50] sm:$0xff]
    %v209 = vld [vmem:[%s3 + $0x58] sm:$0xff]
    %v210 = vld [vmem:[%s3 + $0x60] sm:$0xff]
    %v211 = vld [vmem:[%s3 + $0x68] sm:$0xff]
    %v212 = vld [vmem:[%s3 + $0x70] sm:$0xff]
    %v213 = vld [vmem:[%s3 + $0x78] sm:$0xff]
    %v214 = vld [vmem:[%s4] sm:$0x1]
    %v216 = vlaneseq
    %v217 = vshrl.u32 %v216, 7
    %v218 = vsub.s32 0, %v217
    %v219 = vrot.slane %v214, %v218
    %221 = vmatprep.subr.mxu0 0.0
    %222 = vmatpush1.msra.mxu0 %v198
    %223 = vmatprep.subr.mxu0 0.0
    %224 = vmatpush1.msra.mxu0 %v199
    %225 = vmatprep.subr.mxu0 0.0
    %226 = vmatpush1.msra.mxu0 %v200
    %227 = vmatprep.subr.mxu0 0.0
    %228 = vmatpush1.msra.mxu0 %v201
    %229 = vmatprep.subr.mxu0 0.0
    %230 = vmatpush1.msra.mxu0 %v202
    %231 = vmatprep.subr.mxu0 0.0
    %232 = vmatpush1.msra.mxu0 %v203
    %233 = vmatprep.subr.mxu0 0.0
    %234 = vmatpush1.msra.mxu0 %v204
    %235 = vmatprep.subr.mxu0 0.0
    %236 = vmatpush1.msra.mxu0 %v205
    %237 = vmatprep.subr.mxu0 0.0
    %238 = vmatpush1.msra.mxu0 %v206
    %239 = vmatprep.subr.mxu0 0.0
    %240 = vmatpush1.msra.mxu0 %v207
    %241 = vmatprep.subr.mxu0 0.0
    %242 = vmatpush1.msra.mxu0 %v208
    %243 = vmatprep.subr.mxu0 0.0
    %244 = vmatpush1.msra.mxu0 %v209
    %245 = vmatprep.subr.mxu0 0.0
    %246 = vmatpush1.msra.mxu0 %v210
    %247 = vmatprep.subr.mxu0 0.0
    %248 = vmatpush1.msra.mxu0 %v211
    %249 = vmatprep.subr.mxu0 0.0
    %250 = vmatpush1.msra.mxu0 %v212
    %251 = vmatprep.subr.mxu0 0.0
    %252 = vmatpush1.msra.mxu0 %v213
    %253 = vmatprep.subr.mxu0 0.0
    %254 = vmatpush1.msra.mxu0 0.0
    %255 = vmatprep.subr.mxu0 0.0
    %256 = vmatpush1.msra.mxu0 0.0
    %257 = vmatprep.subr.mxu0 0.0
    %258 = vmatpush1.msra.mxu0 0.0
    %259 = vmatprep.subr.mxu0 0.0
    %260 = vmatpush1.msra.mxu0 0.0
    %261 = vmatprep.subr.mxu0 0.0
    %262 = vmatpush1.msra.mxu0 0.0
    %263 = vmatprep.subr.mxu0 0.0
    %264 = vmatpush1.msra.mxu0 0.0
    %265 = vmatprep.subr.mxu0 0.0
    %266 = vmatpush1.msra.mxu0 0.0
    %267 = vmatprep.subr.mxu0 0.0
    %268 = vmatpush1.msra.mxu0 0.0
    %269 = vmatprep.subr.mxu0 0.0
    %270 = vmatpush1.msra.mxu0 0.0
    %271 = vmatprep.subr.mxu0 0.0
    %272 = vmatpush1.msra.mxu0 0.0
    %273 = vmatprep.subr.mxu0 0.0
    %274 = vmatpush1.msra.mxu0 0.0
    %275 = vmatprep.subr.mxu0 0.0
    %276 = vmatpush1.msra.mxu0 0.0
    %277 = vmatprep.subr.mxu0 0.0
    %278 = vmatpush1.msra.mxu0 0.0
    %279 = vmatprep.subr.mxu0 0.0
    %280 = vmatpush1.msra.mxu0 0.0
    %281 = vmatprep.subr.mxu0 0.0
    %282 = vmatpush1.msra.mxu0 0.0
    %283 = vmatprep.subr.mxu0 0.0
    %284 = vmatpush1.msra.mxu0 0.0
    %285 = vmatprep.mubr.f32.mxu0 0.0
    %286 = vmatmul.mubr.f32.gmra.mrb[0].mxu0 %v197
    %v287 = vpop.f32.mrb[0].mxu0
    %v288 = vadd.f32 %v219, %v287
    %v289 = vpop.f32.mrb[0].mxu0
    %290 = vdwg.mxu0
    %v291 = vmax.f32 %v288, 0.0
    %v292 = vld [vmem:[%s5] sm:$0xff]
    %v293 = vld [vmem:[%s5 + $0x8] sm:$0xff]
    %v294 = vld [vmem:[%s5 + $0x10] sm:$0xff]
    %v295 = vld [vmem:[%s5 + $0x18] sm:$0xff]
    %v296 = vld [vmem:[%s5 + $0x20] sm:$0xff]
    %v297 = vld [vmem:[%s5 + $0x28] sm:$0xff]
    %v298 = vld [vmem:[%s5 + $0x30] sm:$0xff]
    %v299 = vld [vmem:[%s5 + $0x38] sm:$0xff]
    %v300 = vld [vmem:[%s5 + $0x40] sm:$0xff]
    %v301 = vld [vmem:[%s5 + $0x48] sm:$0xff]
    %v302 = vld [vmem:[%s5 + $0x50] sm:$0xff]
    %v303 = vld [vmem:[%s5 + $0x58] sm:$0xff]
    %v304 = vld [vmem:[%s5 + $0x60] sm:$0xff]
    %v305 = vld [vmem:[%s5 + $0x68] sm:$0xff]
    %v306 = vld [vmem:[%s5 + $0x70] sm:$0xff]
    %v307 = vld [vmem:[%s5 + $0x78] sm:$0xff]
    %v308 = vld [vmem:[%s6] sm:$0x1]
    %v310 = vlaneseq
    %v311 = vshrl.u32 %v310, 7
    %v312 = vsub.s32 0, %v311
    %v313 = vrot.slane %v308, %v312
    %315 = vmatprep.subr.mxu0 0.0
    %316 = vmatpush1.msra.mxu0 %v292
    %317 = vmatprep.subr.mxu0 0.0
    %318 = vmatpush1.msra.mxu0 %v293
    %319 = vmatprep.subr.mxu0 0.0
    %320 = vmatpush1.msra.mxu0 %v294
    %321 = vmatprep.subr.mxu0 0.0
    %322 = vmatpush1.msra.mxu0 %v295
    %323 = vmatprep.subr.mxu0 0.0
    %324 = vmatpush1.msra.mxu0 %v296
    %325 = vmatprep.subr.mxu0 0.0
    %326 = vmatpush1.msra.mxu0 %v297
    %327 = vmatprep.subr.mxu0 0.0
    %328 = vmatpush1.msra.mxu0 %v298
    %329 = vmatprep.subr.mxu0 0.0
    %330 = vmatpush1.msra.mxu0 %v299
    %331 = vmatprep.subr.mxu0 0.0
    %332 = vmatpush1.msra.mxu0 %v300
    %333 = vmatprep.subr.mxu0 0.0
    %334 = vmatpush1.msra.mxu0 %v301
    %335 = vmatprep.subr.mxu0 0.0
    %336 = vmatpush1.msra.mxu0 %v302
    %337 = vmatprep.subr.mxu0 0.0
    %338 = vmatpush1.msra.mxu0 %v303
    %339 = vmatprep.subr.mxu0 0.0
    %340 = vmatpush1.msra.mxu0 %v304
    %341 = vmatprep.subr.mxu0 0.0
    %342 = vmatpush1.msra.mxu0 %v305
    %343 = vmatprep.subr.mxu0 0.0
    %344 = vmatpush1.msra.mxu0 %v306
    %345 = vmatprep.subr.mxu0 0.0
    %346 = vmatpush1.msra.mxu0 %v307
    %347 = vmatprep.subr.mxu0 0.0
    %348 = vmatpush1.msra.mxu0 0.0
    %349 = vmatprep.subr.mxu0 0.0
    %350 = vmatpush1.msra.mxu0 0.0
    %351 = vmatprep.subr.mxu0 0.0
    %352 = vmatpush1.msra.mxu0 0.0
    %353 = vmatprep.subr.mxu0 0.0
    %354 = vmatpush1.msra.mxu0 0.0
    %355 = vmatprep.subr.mxu0 0.0
    %356 = vmatpush1.msra.mxu0 0.0
    %357 = vmatprep.subr.mxu0 0.0
    %358 = vmatpush1.msra.mxu0 0.0
    %359 = vmatprep.subr.mxu0 0.0
    %360 = vmatpush1.msra.mxu0 0.0
    %361 = vmatprep.subr.mxu0 0.0
    %362 = vmatpush1.msra.mxu0 0.0
    %363 = vmatprep.subr.mxu0 0.0
    %364 = vmatpush1.msra.mxu0 0.0
    %365 = vmatprep.subr.mxu0 0.0
    %366 = vmatpush1.msra.mxu0 0.0
    %367 = vmatprep.subr.mxu0 0.0
    %368 = vmatpush1.msra.mxu0 0.0
    %369 = vmatprep.subr.mxu0 0.0
    %370 = vmatpush1.msra.mxu0 0.0
    %371 = vmatprep.subr.mxu0 0.0
    %372 = vmatpush1.msra.mxu0 0.0
    %373 = vmatprep.subr.mxu0 0.0
    %374 = vmatpush1.msra.mxu0 0.0
    %375 = vmatprep.subr.mxu0 0.0
    %376 = vmatpush1.msra.mxu0 0.0
    %377 = vmatprep.subr.mxu0 0.0
    %378 = vmatpush1.msra.mxu0 0.0
    %379 = vmatprep.mubr.f32.mxu0 0.0
    %380 = vmatmul.mubr.f32.gmra.mrb[0].mxu0 %v291
    %v381 = vpop.f32.mrb[0].mxu0
    %v382 = vadd.f32 %v313, %v381
    %v383 = vpop.f32.mrb[0].mxu0
    %384 = vdwg.mxu0
    %v385 = vlaneseq
    %v386 = vand.u32 %v385, 127
    %v387 = vld [vmem:[#allocation5] sm:$0xff]
    %v388 = vld [vmem:[#allocation5 + $0x8] sm:$0xff]
    %v389 = vld [vmem:[%s8] sm:$0xff]
    %v390 = vld [vmem:[%s8 + $0x8] sm:$0xff]
    %v391 = vld [vmem:[%s8 + $0x10] sm:$0xff]
    %v392 = vld [vmem:[%s8 + $0x18] sm:$0xff]
    %v393 = vld [vmem:[%s8 + $0x20] sm:$0xff]
    %v394 = vld [vmem:[%s8 + $0x28] sm:$0xff]
    %v395 = vld [vmem:[%s8 + $0x30] sm:$0xff]
    %v396 = vld [vmem:[%s8 + $0x38] sm:$0xff]
    %v397 = vld [vmem:[%s8 + $0x40] sm:$0xff]
    %v398 = vld [vmem:[%s8 + $0x48] sm:$0xff]
    %v399 = vld [vmem:[%s8 + $0x50] sm:$0xff]
    %v400 = vld [vmem:[%s8 + $0x58] sm:$0xff]
    %v401 = vld [vmem:[%s8 + $0x60] sm:$0xff]
    %v402 = vld [vmem:[%s8 + $0x68] sm:$0xff]
    %v403 = vld [vmem:[%s8 + $0x70] sm:$0xff]
    %v404 = vld [vmem:[%s8 + $0x78] sm:$0xff]
    %v405 = vmul.f32 %v389, %v389
    %v406 = vmul.f32 %v390, %v390
    %v407 = vmul.f32 %v391, %v391
    %v408 = vmul.f32 %v392, %v392
    %v409 = vmul.f32 %v393, %v393
    %v410 = vmul.f32 %v394, %v394
    %v411 = vmul.f32 %v395, %v395
    %v412 = vmul.f32 %v396, %v396
    %v413 = vmul.f32 %v397, %v397
    %v414 = vmul.f32 %v398, %v398
    %v415 = vmul.f32 %v399, %v399
    %v416 = vmul.f32 %v400, %v400
    %v417 = vmul.f32 %v401, %v401
    %v418 = vmul.f32 %v402, %v402
    %v419 = vmul.f32 %v403, %v403
    %v420 = vmul.f32 %v404, %v404
    %vm421 = vcmask 130048
    %v422 = vsel %vm421, %v405, 0.0
    %v423 = vsel %vm421, %v406, 0.0
    %v424 = vadd.f32 %v422, %v423
    %v425 = vsel %vm421, %v407, 0.0
    %v426 = vadd.f32 %v424, %v425
    %v427 = vsel %vm421, %v408, 0.0
    %v428 = vadd.f32 %v426, %v427
    %v429 = vsel %vm421, %v409, 0.0
    %v430 = vadd.f32 %v428, %v429
    %v431 = vsel %vm421, %v410, 0.0
    %v432 = vadd.f32 %v430, %v431
    %v433 = vsel %vm421, %v411, 0.0
    %v434 = vadd.f32 %v432, %v433
    %v435 = vsel %vm421, %v412, 0.0
    %v436 = vadd.f32 %v434, %v435
    %v437 = vsel %vm421, %v413, 0.0
    %v438 = vadd.f32 %v436, %v437
    %v439 = vsel %vm421, %v414, 0.0
    %v440 = vadd.f32 %v438, %v439
    %v441 = vsel %vm421, %v415, 0.0
    %v442 = vadd.f32 %v440, %v441
    %v443 = vsel %vm421, %v416, 0.0
    %v444 = vadd.f32 %v442, %v443
    %v445 = vsel %vm421, %v417, 0.0
    %v446 = vadd.f32 %v444, %v445
    %v447 = vsel %vm421, %v418, 0.0
    %v448 = vadd.f32 %v446, %v447
    %v449 = vsel %vm421, %v419, 0.0
    %v450 = vadd.f32 %v448, %v449
    %v451 = vsel %vm421, %v420, 0.0
    %v452 = vadd.f32 %v450, %v451
    %v453 = vrot.slane %v452, 4
    %v454 = vadd.f32 %v452, %v453
    %v455 = vrot.slane %v454, 2
    %v456 = vadd.f32 %v454, %v455
    %v457 = vrot.slane %v456, 1
    %v458 = vadd.f32 %v456, %v457
    %459 = vmatprep.subr.mxu0 0.0
    %460 = vmatpush1.msra.mxu0 %v389
    %461 = vmatprep.subr.mxu0 0.0
    %462 = vmatpush1.msra.mxu0 %v390
    %463 = vmatprep.subr.mxu0 0.0
    %464 = vmatpush1.msra.mxu0 %v391
    %465 = vmatprep.subr.mxu0 0.0
    %466 = vmatpush1.msra.mxu0 %v392
    %467 = vmatprep.subr.mxu0 0.0
    %468 = vmatpush1.msra.mxu0 %v393
    %469 = vmatprep.subr.mxu0 0.0
    %470 = vmatpush1.msra.mxu0 %v394
    %471 = vmatprep.subr.mxu0 0.0
    %472 = vmatpush1.msra.mxu0 %v395
    %473 = vmatprep.subr.mxu0 0.0
    %474 = vmatpush1.msra.mxu0 %v396
    %475 = vmatprep.subr.mxu0 0.0
    %476 = vmatpush1.msra.mxu0 %v397
    %477 = vmatprep.subr.mxu0 0.0
    %478 = vmatpush1.msra.mxu0 %v398
    %479 = vmatprep.subr.mxu0 0.0
    %480 = vmatpush1.msra.mxu0 %v399
    %481 = vmatprep.subr.mxu0 0.0
    %482 = vmatpush1.msra.mxu0 %v400
    %483 = vmatprep.subr.mxu0 0.0
    %484 = vmatpush1.msra.mxu0 %v401
    %485 = vmatprep.subr.mxu0 0.0
    %486 = vmatpush1.msra.mxu0 %v402
    %487 = vmatprep.subr.mxu0 0.0
    %488 = vmatpush1.msra.mxu0 %v403
    %489 = vmatprep.subr.mxu0 0.0
    %490 = vmatpush1.msra.mxu0 %v404
    %491 = vmatprep.subr.mxu0 0.0
    %492 = vmatpush1.msra.mxu0 0.0
    %493 = vmatprep.subr.mxu0 0.0
    %494 = vmatpush1.msra.mxu0 0.0
    %495 = vmatprep.subr.mxu0 0.0
    %496 = vmatpush1.msra.mxu0 0.0
    %497 = vmatprep.subr.mxu0 0.0
    %498 = vmatpush1.msra.mxu0 0.0
    %499 = vmatprep.subr.mxu0 0.0
    %500 = vmatpush1.msra.mxu0 0.0
    %501 = vmatprep.subr.mxu0 0.0
    %502 = vmatpush1.msra.mxu0 0.0
    %503 = vmatprep.subr.mxu0 0.0
    %504 = vmatpush1.msra.mxu0 0.0
    %505 = vmatprep.subr.mxu0 0.0
    %506 = vmatpush1.msra.mxu0 0.0
    %507 = vmatprep.subr.mxu0 0.0
    %508 = vmatpush1.msra.mxu0 0.0
    %509 = vmatprep.subr.mxu0 0.0
    %510 = vmatpush1.msra.mxu0 0.0
    %511 = vmatprep.subr.mxu0 0.0
    %512 = vmatpush1.msra.mxu0 0.0
    %513 = vmatprep.subr.mxu0 0.0
    %514 = vmatpush1.msra.mxu0 0.0
    %515 = vmatprep.subr.mxu0 0.0
    %516 = vmatpush1.msra.mxu0 0.0
    %517 = vmatprep.subr.mxu0 0.0
    %518 = vmatpush1.msra.mxu0 0.0
    %519 = vmatprep.subr.mxu0 0.0
    %520 = vmatpush1.msra.mxu0 0.0
    %521 = vmatprep.subr.mxu0 0.0
    %522 = vmatpush1.msra.mxu0 0.0
    %523 = vmatprep.mubr.f32.mxu0 0.0
    %524 = vmatmul.mubr.f32.gmra.mrb[0].mxu0 %v382
    %v525 = vpop.f32.mrb[0].mxu0
    %v526 = vadd.f32 0.0, %v525
    %v527 = vpop.f32.mrb[0].mxu0
    %528 = vdwg.mxu0
    %v529 = vmul.f32 %v526, 2.0
    %v530 = vsub.f32 %v458, %v529
    %v531 = vsel %vm421, %v530, inf
    %532 = vmin.xlane.f32.xlu0 %v531
    %v533 = vpop.xlane.xlu0 %532
    %vm534 = vcmp.le.f32.partialorder %v530, %v533
    %v535 = vsel %vm534, %v386, 16
    %v536 = vsel %vm421, %v535, 2147483647
    %v537 = vand.u32 %v536, 65535
    %v538 = vshra.s32 %v536, 16
    %v539 = vcvt.s32.f32 %v537
    %v540 = vcvt.s32.f32 %v538
    %541 = vmin.xlane.f32.xlu0 %v540
    %v542 = vpop.xlane.xlu0 %541
    %vm543 = vcmp.eq.f32.partialorder %v540, %v542
    %v544 = vsel %vm543, %v539, inf
    %545 = vmin.xlane.f32.xlu0 %v544
    %v546 = vpop.xlane.xlu0 %545
    %v547 = vcvt.f32.s32 %v546
    %v548 = vcvt.f32.s32 %v542
    %v549 = vshll.u32 %v548, 16
    %v550 = vadd.s32 %v549, %v547
    %vm551 = vcmp.eq.s32.totalorder %v386, %v550
    %v552 = vsel %vm551, 1, 0
    %v553 = vcvt.s32.f32 %v552
    %v555 = vsel %vm421, %v553, 0
    %557 = vmatprep.subr.mxu0 0.0
    %558 = vmatpush1.msra.mxu0 %v387
    %559 = vmatprep.subr.mxu0 0.0
    %560 = vmatpush1.msra.mxu0 %v388
    %561 = vmatprep.subr.mxu0 0.0
    %562 = vmatpush1.msra.mxu0 0.0
    %563 = vmatprep.subr.mxu0 0.0
    %564 = vmatpush1.msra.mxu0 0.0
    %565 = vmatprep.subr.mxu0 0.0
    %566 = vmatpush1.msra.mxu0 0.0
    %567 = vmatprep.subr.mxu0 0.0
    %568 = vmatpush1.msra.mxu0 0.0
    %569 = vmatprep.subr.mxu0 0.0
    %570 = vmatpush1.msra.mxu0 0.0
    %571 = vmatprep.subr.mxu0 0.0
    %572 = vmatpush1.msra.mxu0 0.0
    %573 = vmatprep.subr.mxu0 0.0
    %574 = vmatpush1.msra.mxu0 0.0
    %575 = vmatprep.subr.mxu0 0.0
    %576 = vmatpush1.msra.mxu0 0.0
    %577 = vmatprep.subr.mxu0 0.0
    %578 = vmatpush1.msra.mxu0 0.0
    %579 = vmatprep.subr.mxu0 0.0
    %580 = vmatpush1.msra.mxu0 0.0
    %581 = vmatprep.subr.mxu0 0.0
    %582 = vmatpush1.msra.mxu0 0.0
    %583 = vmatprep.subr.mxu0 0.0
    %584 = vmatpush1.msra.mxu0 0.0
    %585 = vmatprep.subr.mxu0 0.0
    %586 = vmatpush1.msra.mxu0 0.0
    %587 = vmatprep.subr.mxu0 0.0
    %588 = vmatpush1.msra.mxu0 0.0
    %589 = vmatprep.subr.mxu0 0.0
    %590 = vmatpush1.msra.mxu0 0.0
    %591 = vmatprep.subr.mxu0 0.0
    %592 = vmatpush1.msra.mxu0 0.0
    %593 = vmatprep.subr.mxu0 0.0
    %594 = vmatpush1.msra.mxu0 0.0
    %595 = vmatprep.subr.mxu0 0.0
    %596 = vmatpush1.msra.mxu0 0.0
    %597 = vmatprep.subr.mxu0 0.0
    %598 = vmatpush1.msra.mxu0 0.0
    %599 = vmatprep.subr.mxu0 0.0
    %600 = vmatpush1.msra.mxu0 0.0
    %601 = vmatprep.subr.mxu0 0.0
    %602 = vmatpush1.msra.mxu0 0.0
    %603 = vmatprep.subr.mxu0 0.0
    %604 = vmatpush1.msra.mxu0 0.0
    %605 = vmatprep.subr.mxu0 0.0
    %606 = vmatpush1.msra.mxu0 0.0
    %607 = vmatprep.subr.mxu0 0.0
    %608 = vmatpush1.msra.mxu0 0.0
    %609 = vmatprep.subr.mxu0 0.0
    %610 = vmatpush1.msra.mxu0 0.0
    %611 = vmatprep.subr.mxu0 0.0
    %612 = vmatpush1.msra.mxu0 0.0
    %613 = vmatprep.subr.mxu0 0.0
    %614 = vmatpush1.msra.mxu0 0.0
    %615 = vmatprep.subr.mxu0 0.0
    %616 = vmatpush1.msra.mxu0 0.0
    %617 = vmatprep.subr.mxu0 0.0
    %618 = vmatpush1.msra.mxu0 0.0
    %619 = vmatprep.subr.mxu0 0.0
    %620 = vmatpush1.msra.mxu0 0.0
    %621 = vmatprep.mubr.f32.mxu0 0.0
    %622 = vmatmul.mubr.f32.gmra.mrb[0].mxu0 %v555
    %v623 = vpop.f32.mrb[0].mxu0
    %v624 = vadd.f32 0.0, %v623
    %v625 = vpop.f32.mrb[0].mxu0
    %626 = vdwg.mxu0
    %v627 = vadd.f32 %v624, 0.0
    %v628 = vsub.f32 %v382, %v624
    %s629 = scalar_lea.vmem [#allocation5], 16
    %v630 = vld [vmem:[%s629] sm:$0xff]
    %v631 = vld [vmem:[%s629 + $0x8] sm:$0xff]
    %s632 = scalar_lea.vmem %s8, 128
    %v633 = vld [vmem:[%s632] sm:$0xff]
    %v634 = vld [vmem:[%s632 + $0x8] sm:$0xff]
    %v635 = vld [vmem:[%s632 + $0x10] sm:$0xff]
    %v636 = vld [vmem:[%s632 + $0x18] sm:$0xff]
    %v637 = vld [vmem:[%s632 + $0x20] sm:$0xff]
    %v638 = vld [vmem:[%s632 + $0x28] sm:$0xff]
    %v639 = vld [vmem:[%s632 + $0x30] sm:$0xff]
    %v640 = vld [vmem:[%s632 + $0x38] sm:$0xff]
    %v641 = vld [vmem:[%s632 + $0x40] sm:$0xff]
    %v642 = vld [vmem:[%s632 + $0x48] sm:$0xff]
    %v643 = vld [vmem:[%s632 + $0x50] sm:$0xff]
    %v644 = vld [vmem:[%s632 + $0x58] sm:$0xff]
    %v645 = vld [vmem:[%s632 + $0x60] sm:$0xff]
    %v646 = vld [vmem:[%s632 + $0x68] sm:$0xff]
    %v647 = vld [vmem:[%s632 + $0x70] sm:$0xff]
    %v648 = vld [vmem:[%s632 + $0x78] sm:$0xff]
    %v649 = vmul.f32 %v633, %v633
    %v650 = vmul.f32 %v634, %v634
    %v651 = vmul.f32 %v635, %v635
    %v652 = vmul.f32 %v636, %v636
    %v653 = vmul.f32 %v637, %v637
    %v654 = vmul.f32 %v638, %v638
    %v655 = vmul.f32 %v639, %v639
    %v656 = vmul.f32 %v640, %v640
    %v657 = vmul.f32 %v641, %v641
    %v658 = vmul.f32 %v642, %v642
    %v659 = vmul.f32 %v643, %v643
    %v660 = vmul.f32 %v644, %v644
    %v661 = vmul.f32 %v645, %v645
    %v662 = vmul.f32 %v646, %v646
    %v663 = vmul.f32 %v647, %v647
    %v664 = vmul.f32 %v648, %v648
    %v665 = vsel %vm421, %v649, 0.0
    %v666 = vsel %vm421, %v650, 0.0
    %v667 = vadd.f32 %v665, %v666
    %v668 = vsel %vm421, %v651, 0.0
    %v669 = vadd.f32 %v667, %v668
    %v670 = vsel %vm421, %v652, 0.0
    %v671 = vadd.f32 %v669, %v670
    %v672 = vsel %vm421, %v653, 0.0
    %v673 = vadd.f32 %v671, %v672
    %v674 = vsel %vm421, %v654, 0.0
    %v675 = vadd.f32 %v673, %v674
    %v676 = vsel %vm421, %v655, 0.0
    %v677 = vadd.f32 %v675, %v676
    %v678 = vsel %vm421, %v656, 0.0
    %v679 = vadd.f32 %v677, %v678
    %v680 = vsel %vm421, %v657, 0.0
    %v681 = vadd.f32 %v679, %v680
    %v682 = vsel %vm421, %v658, 0.0
    %v683 = vadd.f32 %v681, %v682
    %v684 = vsel %vm421, %v659, 0.0
    %v685 = vadd.f32 %v683, %v684
    %v686 = vsel %vm421, %v660, 0.0
    %v687 = vadd.f32 %v685, %v686
    %v688 = vsel %vm421, %v661, 0.0
    %v689 = vadd.f32 %v687, %v688
    %v690 = vsel %vm421, %v662, 0.0
    %v691 = vadd.f32 %v689, %v690
    %v692 = vsel %vm421, %v663, 0.0
    %v693 = vadd.f32 %v691, %v692
    %v694 = vsel %vm421, %v664, 0.0
    %v695 = vadd.f32 %v693, %v694
    %v696 = vrot.slane %v695, 4
    %v697 = vadd.f32 %v695, %v696
    %v698 = vrot.slane %v697, 2
    %v699 = vadd.f32 %v697, %v698
    %v700 = vrot.slane %v699, 1
    %v701 = vadd.f32 %v699, %v700
    %702 = vmatprep.subr.mxu0 0.0
    %703 = vmatpush1.msra.mxu0 %v633
    %704 = vmatprep.subr.mxu0 0.0
    %705 = vmatpush1.msra.mxu0 %v634
    %706 = vmatprep.subr.mxu0 0.0
    %707 = vmatpush1.msra.mxu0 %v635
    %708 = vmatprep.subr.mxu0 0.0
    %709 = vmatpush1.msra.mxu0 %v636
    %710 = vmatprep.subr.mxu0 0.0
    %711 = vmatpush1.msra.mxu0 %v637
    %712 = vmatprep.subr.mxu0 0.0
    %713 = vmatpush1.msra.mxu0 %v638
    %714 = vmatprep.subr.mxu0 0.0
    %715 = vmatpush1.msra.mxu0 %v639
    %716 = vmatprep.subr.mxu0 0.0
    %717 = vmatpush1.msra.mxu0 %v640
    %718 = vmatprep.subr.mxu0 0.0
    %719 = vmatpush1.msra.mxu0 %v641
    %720 = vmatprep.subr.mxu0 0.0
    %721 = vmatpush1.msra.mxu0 %v642
    %722 = vmatprep.subr.mxu0 0.0
    %723 = vmatpush1.msra.mxu0 %v643
    %724 = vmatprep.subr.mxu0 0.0
    %725 = vmatpush1.msra.mxu0 %v644
    %726 = vmatprep.subr.mxu0 0.0
    %727 = vmatpush1.msra.mxu0 %v645
    %728 = vmatprep.subr.mxu0 0.0
    %729 = vmatpush1.msra.mxu0 %v646
    %730 = vmatprep.subr.mxu0 0.0
    %731 = vmatpush1.msra.mxu0 %v647
    %732 = vmatprep.subr.mxu0 0.0
    %733 = vmatpush1.msra.mxu0 %v648
    %734 = vmatprep.subr.mxu0 0.0
    %735 = vmatpush1.msra.mxu0 0.0
    %736 = vmatprep.subr.mxu0 0.0
    %737 = vmatpush1.msra.mxu0 0.0
    %738 = vmatprep.subr.mxu0 0.0
    %739 = vmatpush1.msra.mxu0 0.0
    %740 = vmatprep.subr.mxu0 0.0
    %741 = vmatpush1.msra.mxu0 0.0
    %742 = vmatprep.subr.mxu0 0.0
    %743 = vmatpush1.msra.mxu0 0.0
    %744 = vmatprep.subr.mxu0 0.0
    %745 = vmatpush1.msra.mxu0 0.0
    %746 = vmatprep.subr.mxu0 0.0
    %747 = vmatpush1.msra.mxu0 0.0
    %748 = vmatprep.subr.mxu0 0.0
    %749 = vmatpush1.msra.mxu0 0.0
    %750 = vmatprep.subr.mxu0 0.0
    %751 = vmatpush1.msra.mxu0 0.0
    %752 = vmatprep.subr.mxu0 0.0
    %753 = vmatpush1.msra.mxu0 0.0
    %754 = vmatprep.subr.mxu0 0.0
    %755 = vmatpush1.msra.mxu0 0.0
    %756 = vmatprep.subr.mxu0 0.0
    %757 = vmatpush1.msra.mxu0 0.0
    %758 = vmatprep.subr.mxu0 0.0
    %759 = vmatpush1.msra.mxu0 0.0
    %760 = vmatprep.subr.mxu0 0.0
    %761 = vmatpush1.msra.mxu0 0.0
    %762 = vmatprep.subr.mxu0 0.0
    %763 = vmatpush1.msra.mxu0 0.0
    %764 = vmatprep.subr.mxu0 0.0
    %765 = vmatpush1.msra.mxu0 0.0
    %766 = vmatprep.mubr.f32.mxu0 0.0
    %767 = vmatmul.mubr.f32.gmra.mrb[0].mxu0 %v628
    %v768 = vpop.f32.mrb[0].mxu0
    %v769 = vadd.f32 0.0, %v768
    %v770 = vpop.f32.mrb[0].mxu0
    %771 = vdwg.mxu0
    %v772 = vmul.f32 %v769, 2.0
    %v773 = vsub.f32 %v701, %v772
    %v774 = vsel %vm421, %v773, inf
    %775 = vmin.xlane.f32.xlu0 %v774
    %v776 = vpop.xlane.xlu0 %775
    %vm777 = vcmp.le.f32.partialorder %v773, %v776
    %v778 = vsel %vm777, %v386, 16
    %v779 = vsel %vm421, %v778, 2147483647
    %v780 = vand.u32 %v779, 65535
    %v781 = vshra.s32 %v779, 16
    %v782 = vcvt.s32.f32 %v780
    %v783 = vcvt.s32.f32 %v781
    %784 = vmin.xlane.f32.xlu0 %v783
    %v785 = vpop.xlane.xlu0 %784
    %vm786 = vcmp.eq.f32.partialorder %v783, %v785
    %v787 = vsel %vm786, %v782, inf
    %788 = vmin.xlane.f32.xlu0 %v787
    %v789 = vpop.xlane.xlu0 %788
    %v790 = vcvt.f32.s32 %v789
    %v791 = vcvt.f32.s32 %v785
    %v792 = vshll.u32 %v791, 16
    %v793 = vadd.s32 %v792, %v790
    %vm794 = vcmp.eq.s32.totalorder %v386, %v793
    %v795 = vsel %vm794, 1, 0
    %v796 = vcvt.s32.f32 %v795
    %v798 = vsel %vm421, %v796, 0
    %800 = vmatprep.subr.mxu0 0.0
    %801 = vmatpush1.msra.mxu0 %v630
    %802 = vmatprep.subr.mxu0 0.0
    %803 = vmatpush1.msra.mxu0 %v631
    %804 = vmatprep.subr.mxu0 0.0
    %805 = vmatpush1.msra.mxu0 0.0
    %806 = vmatprep.subr.mxu0 0.0
    %807 = vmatpush1.msra.mxu0 0.0
    %808 = vmatprep.subr.mxu0 0.0
    %809 = vmatpush1.msra.mxu0 0.0
    %810 = vmatprep.subr.mxu0 0.0
    %811 = vmatpush1.msra.mxu0 0.0
    %812 = vmatprep.subr.mxu0 0.0
    %813 = vmatpush1.msra.mxu0 0.0
    %814 = vmatprep.subr.mxu0 0.0
    %815 = vmatpush1.msra.mxu0 0.0
    %816 = vmatprep.subr.mxu0 0.0
    %817 = vmatpush1.msra.mxu0 0.0
    %818 = vmatprep.subr.mxu0 0.0
    %819 = vmatpush1.msra.mxu0 0.0
    %820 = vmatprep.subr.mxu0 0.0
    %821 = vmatpush1.msra.mxu0 0.0
    %822 = vmatprep.subr.mxu0 0.0
    %823 = vmatpush1.msra.mxu0 0.0
    %824 = vmatprep.subr.mxu0 0.0
    %825 = vmatpush1.msra.mxu0 0.0
    %826 = vmatprep.subr.mxu0 0.0
    %827 = vmatpush1.msra.mxu0 0.0
    %828 = vmatprep.subr.mxu0 0.0
    %829 = vmatpush1.msra.mxu0 0.0
    %830 = vmatprep.subr.mxu0 0.0
    %831 = vmatpush1.msra.mxu0 0.0
    %832 = vmatprep.subr.mxu0 0.0
    %833 = vmatpush1.msra.mxu0 0.0
    %834 = vmatprep.subr.mxu0 0.0
    %835 = vmatpush1.msra.mxu0 0.0
    %836 = vmatprep.subr.mxu0 0.0
    %837 = vmatpush1.msra.mxu0 0.0
    %838 = vmatprep.subr.mxu0 0.0
    %839 = vmatpush1.msra.mxu0 0.0
    %840 = vmatprep.subr.mxu0 0.0
    %841 = vmatpush1.msra.mxu0 0.0
    %842 = vmatprep.subr.mxu0 0.0
    %843 = vmatpush1.msra.mxu0 0.0
    %844 = vmatprep.subr.mxu0 0.0
    %845 = vmatpush1.msra.mxu0 0.0
    %846 = vmatprep.subr.mxu0 0.0
    %847 = vmatpush1.msra.mxu0 0.0
    %848 = vmatprep.subr.mxu0 0.0
    %849 = vmatpush1.msra.mxu0 0.0
    %850 = vmatprep.subr.mxu0 0.0
    %851 = vmatpush1.msra.mxu0 0.0
    %852 = vmatprep.subr.mxu0 0.0
    %853 = vmatpush1.msra.mxu0 0.0
    %854 = vmatprep.subr.mxu0 0.0
    %855 = vmatpush1.msra.mxu0 0.0
    %856 = vmatprep.subr.mxu0 0.0
    %857 = vmatpush1.msra.mxu0 0.0
    %858 = vmatprep.subr.mxu0 0.0
    %859 = vmatpush1.msra.mxu0 0.0
    %860 = vmatprep.subr.mxu0 0.0
    %861 = vmatpush1.msra.mxu0 0.0
    %862 = vmatprep.subr.mxu0 0.0
    %863 = vmatpush1.msra.mxu0 0.0
    %864 = vmatprep.mubr.f32.mxu0 0.0
    %865 = vmatmul.mubr.f32.gmra.mrb[0].mxu0 %v798
    %v866 = vpop.f32.mrb[0].mxu0
    %v867 = vadd.f32 0.0, %v866
    %v868 = vpop.f32.mrb[0].mxu0
    %869 = vdwg.mxu0
    %v870 = vadd.f32 %v627, %v867
    %v871 = vsub.f32 %v628, %v867
    %s872 = scalar_lea.vmem [#allocation5], 32
    %v873 = vld [vmem:[%s872] sm:$0xff]
    %v874 = vld [vmem:[%s872 + $0x8] sm:$0xff]
    %s875 = scalar_lea.vmem %s8, 256
    %v876 = vld [vmem:[%s875] sm:$0xff]
    %v877 = vld [vmem:[%s875 + $0x8] sm:$0xff]
    %v878 = vld [vmem:[%s875 + $0x10] sm:$0xff]
    %v879 = vld [vmem:[%s875 + $0x18] sm:$0xff]
    %v880 = vld [vmem:[%s875 + $0x20] sm:$0xff]
    %v881 = vld [vmem:[%s875 + $0x28] sm:$0xff]
    %v882 = vld [vmem:[%s875 + $0x30] sm:$0xff]
    %v883 = vld [vmem:[%s875 + $0x38] sm:$0xff]
    %v884 = vld [vmem:[%s875 + $0x40] sm:$0xff]
    %v885 = vld [vmem:[%s875 + $0x48] sm:$0xff]
    %v886 = vld [vmem:[%s875 + $0x50] sm:$0xff]
    %v887 = vld [vmem:[%s875 + $0x58] sm:$0xff]
    %v888 = vld [vmem:[%s875 + $0x60] sm:$0xff]
    %v889 = vld [vmem:[%s875 + $0x68] sm:$0xff]
    %v890 = vld [vmem:[%s875 + $0x70] sm:$0xff]
    %v891 = vld [vmem:[%s875 + $0x78] sm:$0xff]
    %v892 = vmul.f32 %v876, %v876
    %v893 = vmul.f32 %v877, %v877
    %v894 = vmul.f32 %v878, %v878
    %v895 = vmul.f32 %v879, %v879
    %v896 = vmul.f32 %v880, %v880
    %v897 = vmul.f32 %v881, %v881
    %v898 = vmul.f32 %v882, %v882
    %v899 = vmul.f32 %v883, %v883
    %v900 = vmul.f32 %v884, %v884
    %v901 = vmul.f32 %v885, %v885
    %v902 = vmul.f32 %v886, %v886
    %v903 = vmul.f32 %v887, %v887
    %v904 = vmul.f32 %v888, %v888
    %v905 = vmul.f32 %v889, %v889
    %v906 = vmul.f32 %v890, %v890
    %v907 = vmul.f32 %v891, %v891
    %v908 = vsel %vm421, %v892, 0.0
    %v909 = vsel %vm421, %v893, 0.0
    %v910 = vadd.f32 %v908, %v909
    %v911 = vsel %vm421, %v894, 0.0
    %v912 = vadd.f32 %v910, %v911
    %v913 = vsel %vm421, %v895, 0.0
    %v914 = vadd.f32 %v912, %v913
    %v915 = vsel %vm421, %v896, 0.0
    %v916 = vadd.f32 %v914, %v915
    %v917 = vsel %vm421, %v897, 0.0
    %v918 = vadd.f32 %v916, %v917
    %v919 = vsel %vm421, %v898, 0.0
    %v920 = vadd.f32 %v918, %v919
    %v921 = vsel %vm421, %v899, 0.0
    %v922 = vadd.f32 %v920, %v921
    %v923 = vsel %vm421, %v900, 0.0
    %v924 = vadd.f32 %v922, %v923
    %v925 = vsel %vm421, %v901, 0.0
    %v926 = vadd.f32 %v924, %v925
    %v927 = vsel %vm421, %v902, 0.0
    %v928 = vadd.f32 %v926, %v927
    %v929 = vsel %vm421, %v903, 0.0
    %v930 = vadd.f32 %v928, %v929
    %v931 = vsel %vm421, %v904, 0.0
    %v932 = vadd.f32 %v930, %v931
    %v933 = vsel %vm421, %v905, 0.0
    %v934 = vadd.f32 %v932, %v933
    %v935 = vsel %vm421, %v906, 0.0
    %v936 = vadd.f32 %v934, %v935
    %v937 = vsel %vm421, %v907, 0.0
    %v938 = vadd.f32 %v936, %v937
    %v939 = vrot.slane %v938, 4
    %v940 = vadd.f32 %v938, %v939
    %v941 = vrot.slane %v940, 2
    %v942 = vadd.f32 %v940, %v941
    %v943 = vrot.slane %v942, 1
    %v944 = vadd.f32 %v942, %v943
    %945 = vmatprep.subr.mxu0 0.0
    %946 = vmatpush1.msra.mxu0 %v876
    %947 = vmatprep.subr.mxu0 0.0
    %948 = vmatpush1.msra.mxu0 %v877
    %949 = vmatprep.subr.mxu0 0.0
    %950 = vmatpush1.msra.mxu0 %v878
    %951 = vmatprep.subr.mxu0 0.0
    %952 = vmatpush1.msra.mxu0 %v879
    %953 = vmatprep.subr.mxu0 0.0
    %954 = vmatpush1.msra.mxu0 %v880
    %955 = vmatprep.subr.mxu0 0.0
    %956 = vmatpush1.msra.mxu0 %v881
    %957 = vmatprep.subr.mxu0 0.0
    %958 = vmatpush1.msra.mxu0 %v882
    %959 = vmatprep.subr.mxu0 0.0
    %960 = vmatpush1.msra.mxu0 %v883
    %961 = vmatprep.subr.mxu0 0.0
    %962 = vmatpush1.msra.mxu0 %v884
    %963 = vmatprep.subr.mxu0 0.0
    %964 = vmatpush1.msra.mxu0 %v885
    %965 = vmatprep.subr.mxu0 0.0
    %966 = vmatpush1.msra.mxu0 %v886
    %967 = vmatprep.subr.mxu0 0.0
    %968 = vmatpush1.msra.mxu0 %v887
    %969 = vmatprep.subr.mxu0 0.0
    %970 = vmatpush1.msra.mxu0 %v888
    %971 = vmatprep.subr.mxu0 0.0
    %972 = vmatpush1.msra.mxu0 %v889
    %973 = vmatprep.subr.mxu0 0.0
    %974 = vmatpush1.msra.mxu0 %v890
    %975 = vmatprep.subr.mxu0 0.0
    %976 = vmatpush1.msra.mxu0 %v891
    %977 = vmatprep.subr.mxu0 0.0
    %978 = vmatpush1.msra.mxu0 0.0
    %979 = vmatprep.subr.mxu0 0.0
    %980 = vmatpush1.msra.mxu0 0.0
    %981 = vmatprep.subr.mxu0 0.0
    %982 = vmatpush1.msra.mxu0 0.0
    %983 = vmatprep.subr.mxu0 0.0
    %984 = vmatpush1.msra.mxu0 0.0
    %985 = vmatprep.subr.mxu0 0.0
    %986 = vmatpush1.msra.mxu0 0.0
    %987 = vmatprep.subr.mxu0 0.0
    %988 = vmatpush1.msra.mxu0 0.0
    %989 = vmatprep.subr.mxu0 0.0
    %990 = vmatpush1.msra.mxu0 0.0
    %991 = vmatprep.subr.mxu0 0.0
    %992 = vmatpush1.msra.mxu0 0.0
    %993 = vmatprep.subr.mxu0 0.0
    %994 = vmatpush1.msra.mxu0 0.0
    %995 = vmatprep.subr.mxu0 0.0
    %996 = vmatpush1.msra.mxu0 0.0
    %997 = vmatprep.subr.mxu0 0.0
    %998 = vmatpush1.msra.mxu0 0.0
    %999 = vmatprep.subr.mxu0 0.0
    %1000 = vmatpush1.msra.mxu0 0.0
    %1001 = vmatprep.subr.mxu0 0.0
    %1002 = vmatpush1.msra.mxu0 0.0
    %1003 = vmatprep.subr.mxu0 0.0
    %1004 = vmatpush1.msra.mxu0 0.0
    %1005 = vmatprep.subr.mxu0 0.0
    %1006 = vmatpush1.msra.mxu0 0.0
    %1007 = vmatprep.subr.mxu0 0.0
    %1008 = vmatpush1.msra.mxu0 0.0
    %1009 = vmatprep.mubr.f32.mxu0 0.0
    %1010 = vmatmul.mubr.f32.gmra.mrb[0].mxu0 %v871
    %v1011 = vpop.f32.mrb[0].mxu0
    %v1012 = vadd.f32 0.0, %v1011
    %v1013 = vpop.f32.mrb[0].mxu0
    %1014 = vdwg.mxu0
    %v1015 = vmul.f32 %v1012, 2.0
    %v1016 = vsub.f32 %v944, %v1015
    %v1017 = vsel %vm421, %v1016, inf
    %1018 = vmin.xlane.f32.xlu0 %v1017
    %v1019 = vpop.xlane.xlu0 %1018
    %vm1020 = vcmp.le.f32.partialorder %v1016, %v1019
    %v1021 = vsel %vm1020, %v386, 16
    %v1022 = vsel %vm421, %v1021, 2147483647
    %v1023 = vand.u32 %v1022, 65535
    %v1024 = vshra.s32 %v1022, 16
    %v1025 = vcvt.s32.f32 %v1023
    %v1026 = vcvt.s32.f32 %v1024
    %1027 = vmin.xlane.f32.xlu0 %v1026
    %v1028 = vpop.xlane.xlu0 %1027
    %vm1029 = vcmp.eq.f32.partialorder %v1026, %v1028
    %v1030 = vsel %vm1029, %v1025, inf
    %1031 = vmin.xlane.f32.xlu0 %v1030
    %v1032 = vpop.xlane.xlu0 %1031
    %v1033 = vcvt.f32.s32 %v1032
    %v1034 = vcvt.f32.s32 %v1028
    %v1035 = vshll.u32 %v1034, 16
    %v1036 = vadd.s32 %v1035, %v1033
    %vm1037 = vcmp.eq.s32.totalorder %v386, %v1036
    %v1038 = vsel %vm1037, 1, 0
    %v1039 = vcvt.s32.f32 %v1038
    %v1041 = vsel %vm421, %v1039, 0
    %1043 = vmatprep.subr.mxu0 0.0
    %1044 = vmatpush1.msra.mxu0 %v873
    %1045 = vmatprep.subr.mxu0 0.0
    %1046 = vmatpush1.msra.mxu0 %v874
    %1047 = vmatprep.subr.mxu0 0.0
    %1048 = vmatpush1.msra.mxu0 0.0
    %1049 = vmatprep.subr.mxu0 0.0
    %1050 = vmatpush1.msra.mxu0 0.0
    %1051 = vmatprep.subr.mxu0 0.0
    %1052 = vmatpush1.msra.mxu0 0.0
    %1053 = vmatprep.subr.mxu0 0.0
    %1054 = vmatpush1.msra.mxu0 0.0
    %1055 = vmatprep.subr.mxu0 0.0
    %1056 = vmatpush1.msra.mxu0 0.0
    %1057 = vmatprep.subr.mxu0 0.0
    %1058 = vmatpush1.msra.mxu0 0.0
    %1059 = vmatprep.subr.mxu0 0.0
    %1060 = vmatpush1.msra.mxu0 0.0
    %1061 = vmatprep.subr.mxu0 0.0
    %1062 = vmatpush1.msra.mxu0 0.0
    %1063 = vmatprep.subr.mxu0 0.0
    %1064 = vmatpush1.msra.mxu0 0.0
    %1065 = vmatprep.subr.mxu0 0.0
    %1066 = vmatpush1.msra.mxu0 0.0
    %1067 = vmatprep.subr.mxu0 0.0
    %1068 = vmatpush1.msra.mxu0 0.0
    %1069 = vmatprep.subr.mxu0 0.0
    %1070 = vmatpush1.msra.mxu0 0.0
    %1071 = vmatprep.subr.mxu0 0.0
    %1072 = vmatpush1.msra.mxu0 0.0
    %1073 = vmatprep.subr.mxu0 0.0
    %1074 = vmatpush1.msra.mxu0 0.0
    %1075 = vmatprep.subr.mxu0 0.0
    %1076 = vmatpush1.msra.mxu0 0.0
    %1077 = vmatprep.subr.mxu0 0.0
    %1078 = vmatpush1.msra.mxu0 0.0
    %1079 = vmatprep.subr.mxu0 0.0
    %1080 = vmatpush1.msra.mxu0 0.0
    %1081 = vmatprep.subr.mxu0 0.0
    %1082 = vmatpush1.msra.mxu0 0.0
    %1083 = vmatprep.subr.mxu0 0.0
    %1084 = vmatpush1.msra.mxu0 0.0
    %1085 = vmatprep.subr.mxu0 0.0
    %1086 = vmatpush1.msra.mxu0 0.0
    %1087 = vmatprep.subr.mxu0 0.0
    %1088 = vmatpush1.msra.mxu0 0.0
    %1089 = vmatprep.subr.mxu0 0.0
    %1090 = vmatpush1.msra.mxu0 0.0
    %1091 = vmatprep.subr.mxu0 0.0
    %1092 = vmatpush1.msra.mxu0 0.0
    %1093 = vmatprep.subr.mxu0 0.0
    %1094 = vmatpush1.msra.mxu0 0.0
    %1095 = vmatprep.subr.mxu0 0.0
    %1096 = vmatpush1.msra.mxu0 0.0
    %1097 = vmatprep.subr.mxu0 0.0
    %1098 = vmatpush1.msra.mxu0 0.0
    %1099 = vmatprep.subr.mxu0 0.0
    %1100 = vmatpush1.msra.mxu0 0.0
    %1101 = vmatprep.subr.mxu0 0.0
    %1102 = vmatpush1.msra.mxu0 0.0
    %1103 = vmatprep.subr.mxu0 0.0
    %1104 = vmatpush1.msra.mxu0 0.0
    %1105 = vmatprep.subr.mxu0 0.0
    %1106 = vmatpush1.msra.mxu0 0.0
    %1107 = vmatprep.mubr.f32.mxu0 0.0
    %1108 = vmatmul.mubr.f32.gmra.mrb[0].mxu0 %v1041
    %v1109 = vpop.f32.mrb[0].mxu0
    %v1110 = vadd.f32 0.0, %v1109
    %v1111 = vpop.f32.mrb[0].mxu0
    %1112 = vdwg.mxu0
    %v1113 = vadd.f32 %v870, %v1110
    %1115 = vrot.lane.b32.xlu0 %v628, 8
    %v1116 = vpop.permute.xlu0 %1115
    %1119 = vrot.lane.b32.xlu0 %v871, 16
    %v1120 = vpop.permute.xlu0 %1119
    %vm1122 = vcmask 64512
    %v1123 = vsel %vm1122, %v382, %v1116
    %v1124 = vsel %vm421, %v1123, %v1120
    %vm1125 = vcmask 195584
    %1126 = vst.msk [vmem:[%s16] sm:$0xff] %vm1125, %v1124
    %vm1127 = vcmask 7168
    %v1128 = vsel %vm1127, %v550, %v793
    %vm1129 = vcmask 15360
    %v1130 = vsel %vm1129, %v1128, %v1036
    %vm1131 = vcmask 23552
    %1132 = vst.msk [vmem:[%s17] sm:$0xff] %vm1131, %v1130
    %v1133 = vld [vmem:[%s9] sm:$0xff]
    %v1134 = vld [vmem:[%s9 + $0x8] sm:$0xff]
    %v1135 = vld [vmem:[%s9 + $0x10] sm:$0xff]
    %v1136 = vld [vmem:[%s9 + $0x18] sm:$0xff]
    %v1137 = vld [vmem:[%s9 + $0x20] sm:$0xff]
    %v1138 = vld [vmem:[%s9 + $0x28] sm:$0xff]
    %v1139 = vld [vmem:[%s9 + $0x30] sm:$0xff]
    %v1140 = vld [vmem:[%s9 + $0x38] sm:$0xff]
    %v1141 = vld [vmem:[%s9 + $0x40] sm:$0xff]
    %v1142 = vld [vmem:[%s9 + $0x48] sm:$0xff]
    %v1143 = vld [vmem:[%s9 + $0x50] sm:$0xff]
    %v1144 = vld [vmem:[%s9 + $0x58] sm:$0xff]
    %v1145 = vld [vmem:[%s9 + $0x60] sm:$0xff]
    %v1146 = vld [vmem:[%s9 + $0x68] sm:$0xff]
    %v1147 = vld [vmem:[%s9 + $0x70] sm:$0xff]
    %v1148 = vld [vmem:[%s9 + $0x78] sm:$0xff]
    %v1149 = vld [vmem:[%s10] sm:$0x1]
    %v1151 = vlaneseq
    %v1152 = vshrl.u32 %v1151, 7
    %v1153 = vsub.s32 0, %v1152
    %v1154 = vrot.slane %v1149, %v1153
    %1156 = vmatprep.subr.mxu0 0.0
    %1157 = vmatpush1.msra.mxu0 %v1133
    %1158 = vmatprep.subr.mxu0 0.0
    %1159 = vmatpush1.msra.mxu0 %v1134
    %1160 = vmatprep.subr.mxu0 0.0
    %1161 = vmatpush1.msra.mxu0 %v1135
    %1162 = vmatprep.subr.mxu0 0.0
    %1163 = vmatpush1.msra.mxu0 %v1136
    %1164 = vmatprep.subr.mxu0 0.0
    %1165 = vmatpush1.msra.mxu0 %v1137
    %1166 = vmatprep.subr.mxu0 0.0
    %1167 = vmatpush1.msra.mxu0 %v1138
    %1168 = vmatprep.subr.mxu0 0.0
    %1169 = vmatpush1.msra.mxu0 %v1139
    %1170 = vmatprep.subr.mxu0 0.0
    %1171 = vmatpush1.msra.mxu0 %v1140
    %1172 = vmatprep.subr.mxu0 0.0
    %1173 = vmatpush1.msra.mxu0 %v1141
    %1174 = vmatprep.subr.mxu0 0.0
    %1175 = vmatpush1.msra.mxu0 %v1142
    %1176 = vmatprep.subr.mxu0 0.0
    %1177 = vmatpush1.msra.mxu0 %v1143
    %1178 = vmatprep.subr.mxu0 0.0
    %1179 = vmatpush1.msra.mxu0 %v1144
    %1180 = vmatprep.subr.mxu0 0.0
    %1181 = vmatpush1.msra.mxu0 %v1145
    %1182 = vmatprep.subr.mxu0 0.0
    %1183 = vmatpush1.msra.mxu0 %v1146
    %1184 = vmatprep.subr.mxu0 0.0
    %1185 = vmatpush1.msra.mxu0 %v1147
    %1186 = vmatprep.subr.mxu0 0.0
    %1187 = vmatpush1.msra.mxu0 %v1148
    %1188 = vmatprep.subr.mxu0 0.0
    %1189 = vmatpush1.msra.mxu0 0.0
    %1190 = vmatprep.subr.mxu0 0.0
    %1191 = vmatpush1.msra.mxu0 0.0
    %1192 = vmatprep.subr.mxu0 0.0
    %1193 = vmatpush1.msra.mxu0 0.0
    %1194 = vmatprep.subr.mxu0 0.0
    %1195 = vmatpush1.msra.mxu0 0.0
    %1196 = vmatprep.subr.mxu0 0.0
    %1197 = vmatpush1.msra.mxu0 0.0
    %1198 = vmatprep.subr.mxu0 0.0
    %1199 = vmatpush1.msra.mxu0 0.0
    %1200 = vmatprep.subr.mxu0 0.0
    %1201 = vmatpush1.msra.mxu0 0.0
    %1202 = vmatprep.subr.mxu0 0.0
    %1203 = vmatpush1.msra.mxu0 0.0
    %1204 = vmatprep.subr.mxu0 0.0
    %1205 = vmatpush1.msra.mxu0 0.0
    %1206 = vmatprep.subr.mxu0 0.0
    %1207 = vmatpush1.msra.mxu0 0.0
    %1208 = vmatprep.subr.mxu0 0.0
    %1209 = vmatpush1.msra.mxu0 0.0
    %1210 = vmatprep.subr.mxu0 0.0
    %1211 = vmatpush1.msra.mxu0 0.0
    %1212 = vmatprep.subr.mxu0 0.0
    %1213 = vmatpush1.msra.mxu0 0.0
    %1214 = vmatprep.subr.mxu0 0.0
    %1215 = vmatpush1.msra.mxu0 0.0
    %1216 = vmatprep.subr.mxu0 0.0
    %1217 = vmatpush1.msra.mxu0 0.0
    %1218 = vmatprep.subr.mxu0 0.0
    %1219 = vmatpush1.msra.mxu0 0.0
    %1220 = vmatprep.mubr.f32.mxu0 0.0
    %1221 = vmatmul.mubr.f32.gmra.mrb[0].mxu0 %v1113
    %v1222 = vpop.f32.mrb[0].mxu0
    %v1223 = vadd.f32 %v1154, %v1222
    %v1224 = vpop.f32.mrb[0].mxu0
    %1225 = vdwg.mxu0
    %v1226 = vmax.f32 %v1223, 0.0
    %v1227 = vld [vmem:[#allocation7] sm:$0xff]
    %v1228 = vld [vmem:[#allocation7 + $0x8] sm:$0xff]
    %v1229 = vld [vmem:[#allocation7 + $0x10] sm:$0xff]
    %v1230 = vld [vmem:[#allocation7 + $0x18] sm:$0xff]
    %v1231 = vld [vmem:[#allocation7 + $0x20] sm:$0xff]
    %v1232 = vld [vmem:[#allocation7 + $0x28] sm:$0xff]
    %v1233 = vld [vmem:[#allocation7 + $0x30] sm:$0xff]
    %v1234 = vld [vmem:[#allocation7 + $0x38] sm:$0xff]
    %v1235 = vld [vmem:[#allocation7 + $0x40] sm:$0xff]
    %v1236 = vld [vmem:[#allocation7 + $0x48] sm:$0xff]
    %v1237 = vld [vmem:[#allocation7 + $0x50] sm:$0xff]
    %v1238 = vld [vmem:[#allocation7 + $0x58] sm:$0xff]
    %v1239 = vld [vmem:[#allocation7 + $0x60] sm:$0xff]
    %v1240 = vld [vmem:[#allocation7 + $0x68] sm:$0xff]
    %v1241 = vld [vmem:[#allocation7 + $0x70] sm:$0xff]
    %v1242 = vld [vmem:[#allocation7 + $0x78] sm:$0xff]
    %v1243 = vld [vmem:[%s12] sm:$0x1]
    %v1245 = vlaneseq
    %v1246 = vshrl.u32 %v1245, 7
    %v1247 = vsub.s32 0, %v1246
    %v1248 = vrot.slane %v1243, %v1247
    %1250 = vmatprep.subr.mxu0 0.0
    %1251 = vmatpush1.msra.mxu0 %v1227
    %1252 = vmatprep.subr.mxu0 0.0
    %1253 = vmatpush1.msra.mxu0 %v1228
    %1254 = vmatprep.subr.mxu0 0.0
    %1255 = vmatpush1.msra.mxu0 %v1229
    %1256 = vmatprep.subr.mxu0 0.0
    %1257 = vmatpush1.msra.mxu0 %v1230
    %1258 = vmatprep.subr.mxu0 0.0
    %1259 = vmatpush1.msra.mxu0 %v1231
    %1260 = vmatprep.subr.mxu0 0.0
    %1261 = vmatpush1.msra.mxu0 %v1232
    %1262 = vmatprep.subr.mxu0 0.0
    %1263 = vmatpush1.msra.mxu0 %v1233
    %1264 = vmatprep.subr.mxu0 0.0
    %1265 = vmatpush1.msra.mxu0 %v1234
    %1266 = vmatprep.subr.mxu0 0.0
    %1267 = vmatpush1.msra.mxu0 %v1235
    %1268 = vmatprep.subr.mxu0 0.0
    %1269 = vmatpush1.msra.mxu0 %v1236
    %1270 = vmatprep.subr.mxu0 0.0
    %1271 = vmatpush1.msra.mxu0 %v1237
    %1272 = vmatprep.subr.mxu0 0.0
    %1273 = vmatpush1.msra.mxu0 %v1238
    %1274 = vmatprep.subr.mxu0 0.0
    %1275 = vmatpush1.msra.mxu0 %v1239
    %1276 = vmatprep.subr.mxu0 0.0
    %1277 = vmatpush1.msra.mxu0 %v1240
    %1278 = vmatprep.subr.mxu0 0.0
    %1279 = vmatpush1.msra.mxu0 %v1241
    %1280 = vmatprep.subr.mxu0 0.0
    %1281 = vmatpush1.msra.mxu0 %v1242
    %1282 = vmatprep.subr.mxu0 0.0
    %1283 = vmatpush1.msra.mxu0 0.0
    %1284 = vmatprep.subr.mxu0 0.0
    %1285 = vmatpush1.msra.mxu0 0.0
    %1286 = vmatprep.subr.mxu0 0.0
    %1287 = vmatpush1.msra.mxu0 0.0
    %1288 = vmatprep.subr.mxu0 0.0
    %1289 = vmatpush1.msra.mxu0 0.0
    %1290 = vmatprep.subr.mxu0 0.0
    %1291 = vmatpush1.msra.mxu0 0.0
    %1292 = vmatprep.subr.mxu0 0.0
    %1293 = vmatpush1.msra.mxu0 0.0
    %1294 = vmatprep.subr.mxu0 0.0
    %1295 = vmatpush1.msra.mxu0 0.0
    %1296 = vmatprep.subr.mxu0 0.0
    %1297 = vmatpush1.msra.mxu0 0.0
    %1298 = vmatprep.subr.mxu0 0.0
    %1299 = vmatpush1.msra.mxu0 0.0
    %1300 = vmatprep.subr.mxu0 0.0
    %1301 = vmatpush1.msra.mxu0 0.0
    %1302 = vmatprep.subr.mxu0 0.0
    %1303 = vmatpush1.msra.mxu0 0.0
    %1304 = vmatprep.subr.mxu0 0.0
    %1305 = vmatpush1.msra.mxu0 0.0
    %1306 = vmatprep.subr.mxu0 0.0
    %1307 = vmatpush1.msra.mxu0 0.0
    %1308 = vmatprep.subr.mxu0 0.0
    %1309 = vmatpush1.msra.mxu0 0.0
    %1310 = vmatprep.subr.mxu0 0.0
    %1311 = vmatpush1.msra.mxu0 0.0
    %1312 = vmatprep.subr.mxu0 0.0
    %1313 = vmatpush1.msra.mxu0 0.0
    %1314 = vmatprep.mubr.f32.mxu0 0.0
    %1315 = vmatmul.mubr.f32.gmra.mrb[0].mxu0 %v1226
    %v1316 = vpop.f32.mrb[0].mxu0
    %v1317 = vadd.f32 %v1248, %v1316
    %v1318 = vpop.f32.mrb[0].mxu0
    %1319 = vdwg.mxu0
    %v1320 = vmax.f32 %v1317, 0.0
    %v1321 = vld [vmem:[#allocation8] sm:$0xff]
    %v1322 = vld [vmem:[#allocation8 + $0x8] sm:$0xff]
    %v1323 = vld [vmem:[#allocation8 + $0x10] sm:$0xff]
    %v1324 = vld [vmem:[#allocation8 + $0x18] sm:$0xff]
    %v1325 = vld [vmem:[#allocation8 + $0x20] sm:$0xff]
    %v1326 = vld [vmem:[#allocation8 + $0x28] sm:$0xff]
    %v1327 = vld [vmem:[#allocation8 + $0x30] sm:$0xff]
    %v1328 = vld [vmem:[#allocation8 + $0x38] sm:$0xff]
    %v1329 = vld [vmem:[#allocation8 + $0x40] sm:$0xff]
    %v1330 = vld [vmem:[#allocation8 + $0x48] sm:$0xff]
    %v1331 = vld [vmem:[#allocation8 + $0x50] sm:$0xff]
    %v1332 = vld [vmem:[#allocation8 + $0x58] sm:$0xff]
    %v1333 = vld [vmem:[#allocation8 + $0x60] sm:$0xff]
    %v1334 = vld [vmem:[#allocation8 + $0x68] sm:$0xff]
    %v1335 = vld [vmem:[#allocation8 + $0x70] sm:$0xff]
    %v1336 = vld [vmem:[#allocation8 + $0x78] sm:$0xff]
    %v1337 = vld [vmem:[%s14] sm:$0x1]
    %v1339 = vlaneseq
    %v1340 = vshrl.u32 %v1339, 7
    %v1341 = vsub.s32 0, %v1340
    %v1342 = vrot.slane %v1337, %v1341
    %1344 = vmatprep.subr.mxu0 0.0
    %1345 = vmatpush1.msra.mxu0 %v1321
    %1346 = vmatprep.subr.mxu0 0.0
    %1347 = vmatpush1.msra.mxu0 %v1322
    %1348 = vmatprep.subr.mxu0 0.0
    %1349 = vmatpush1.msra.mxu0 %v1323
    %1350 = vmatprep.subr.mxu0 0.0
    %1351 = vmatpush1.msra.mxu0 %v1324
    %1352 = vmatprep.subr.mxu0 0.0
    %1353 = vmatpush1.msra.mxu0 %v1325
    %1354 = vmatprep.subr.mxu0 0.0
    %1355 = vmatpush1.msra.mxu0 %v1326
    %1356 = vmatprep.subr.mxu0 0.0
    %1357 = vmatpush1.msra.mxu0 %v1327
    %1358 = vmatprep.subr.mxu0 0.0
    %1359 = vmatpush1.msra.mxu0 %v1328
    %1360 = vmatprep.subr.mxu0 0.0
    %1361 = vmatpush1.msra.mxu0 %v1329
    %1362 = vmatprep.subr.mxu0 0.0
    %1363 = vmatpush1.msra.mxu0 %v1330
    %1364 = vmatprep.subr.mxu0 0.0
    %1365 = vmatpush1.msra.mxu0 %v1331
    %1366 = vmatprep.subr.mxu0 0.0
    %1367 = vmatpush1.msra.mxu0 %v1332
    %1368 = vmatprep.subr.mxu0 0.0
    %1369 = vmatpush1.msra.mxu0 %v1333
    %1370 = vmatprep.subr.mxu0 0.0
    %1371 = vmatpush1.msra.mxu0 %v1334
    %1372 = vmatprep.subr.mxu0 0.0
    %1373 = vmatpush1.msra.mxu0 %v1335
    %1374 = vmatprep.subr.mxu0 0.0
    %1375 = vmatpush1.msra.mxu0 %v1336
    %1376 = vmatprep.subr.mxu0 0.0
    %1377 = vmatpush1.msra.mxu0 0.0
    %1378 = vmatprep.subr.mxu0 0.0
    %1379 = vmatpush1.msra.mxu0 0.0
    %1380 = vmatprep.subr.mxu0 0.0
    %1381 = vmatpush1.msra.mxu0 0.0
    %1382 = vmatprep.subr.mxu0 0.0
    %1383 = vmatpush1.msra.mxu0 0.0
    %1384 = vmatprep.subr.mxu0 0.0
    %1385 = vmatpush1.msra.mxu0 0.0
    %1386 = vmatprep.subr.mxu0 0.0
    %1387 = vmatpush1.msra.mxu0 0.0
    %1388 = vmatprep.subr.mxu0 0.0
    %1389 = vmatpush1.msra.mxu0 0.0
    %1390 = vmatprep.subr.mxu0 0.0
    %1391 = vmatpush1.msra.mxu0 0.0
    %1392 = vmatprep.subr.mxu0 0.0
    %1393 = vmatpush1.msra.mxu0 0.0
    %1394 = vmatprep.subr.mxu0 0.0
    %1395 = vmatpush1.msra.mxu0 0.0
    %1396 = vmatprep.subr.mxu0 0.0
    %1397 = vmatpush1.msra.mxu0 0.0
    %1398 = vmatprep.subr.mxu0 0.0
    %1399 = vmatpush1.msra.mxu0 0.0
    %1400 = vmatprep.subr.mxu0 0.0
    %1401 = vmatpush1.msra.mxu0 0.0
    %1402 = vmatprep.subr.mxu0 0.0
    %1403 = vmatpush1.msra.mxu0 0.0
    %1404 = vmatprep.subr.mxu0 0.0
    %1405 = vmatpush1.msra.mxu0 0.0
    %1406 = vmatprep.subr.mxu0 0.0
    %1407 = vmatpush1.msra.mxu0 0.0
    %1408 = vmatprep.mubr.f32.mxu0 0.0
    %1409 = vmatmul.mubr.f32.gmra.mrb[0].mxu0 %v1320
    %v1410 = vpop.f32.mrb[0].mxu0
    %v1411 = vadd.f32 %v1342, %v1410
    %v1412 = vpop.f32.mrb[0].mxu0
    %1413 = vdwg.mxu0
    %1414 = vst [vmem:[#allocation10] sm:$0xff] %v1411
    // Predicated region
    $region78: #{rqvae_forward.1} parent=1 // pred_check
      _
    $region79: #{rqvae_forward.1} parent=1 // pred_check_branch
      %1416 = sbr.rel (0) target = $region81
    $region80: #{rqvae_forward.1} parent=1 // pred_region
      %s1418 = ssub.s32 128, 128
      %1419 = vsyncadd [#allocation4], %s1418
      %s1421 = sshll.u32 [#allocation10], 4
      %s1422 = int_to_ptr.vmem [resolvable:$true] %s1421
      %1424 = dma.vmem_to_hbm [thread:$0]  %s1422, 128, %s15, [#allocation4]
    $region81: #{rqvae_forward.1} parent=1 // pred_fallthru
      _
    // Predicated region
    $region82: #{rqvae_forward.1} parent=1 // pred_check
      _
    $region83: #{rqvae_forward.1} parent=1 // pred_check_branch
      %1426 = sbr.rel (0) target = $region85
    $region84: #{rqvae_forward.1} parent=1 // pred_region
      _
    $region85: #{rqvae_forward.1} parent=1 // pred_fallthru
      _
    // Predicated region
    $region86: #{rqvae_forward.1} parent=1 // pred_check
      _
    $region87: #{rqvae_forward.1} parent=1 // pred_check_branch
      %1428 = sbr.rel (0) target = $region89
    $region88: #{rqvae_forward.1} parent=1 // pred_region
      _
    $region89: #{rqvae_forward.1} parent=1 // pred_fallthru
      _
    // Predicated region
    $region90: #{rqvae_forward.1} parent=1 // pred_check
      _
    $region91: #{rqvae_forward.1} parent=1 // pred_check_branch
      %1430 = sbr.rel (0) target = $region93
    $region92: #{rqvae_forward.1} parent=1 // pred_region
      %1431 = dma.done [#allocation4], 128
    $region93: #{rqvae_forward.1} parent=1 // pred_fallthru
      _
    // Predicated region
    $region94: #{rqvae_forward.1} parent=1 // pred_check
      _
    $region95: #{rqvae_forward.1} parent=1 // pred_check_branch
      %1433 = sbr.rel (0) target = $region97
    $region96: #{rqvae_forward.1} parent=1 // pred_region
      _
    $region97: #{rqvae_forward.1} parent=1 // pred_fallthru
      _
    // Predicated region
    $region98: #{rqvae_forward.1} parent=1 // pred_check
      _
    $region99: #{rqvae_forward.1} parent=1 // pred_check_branch
      %1435 = sbr.rel (0) target = $region101
    $region100: #{rqvae_forward.1} parent=1 // pred_region
      _
    $region101: #{rqvae_forward.1} parent=1 // pred_fallthru
      _
    %1436 = vsyncpa [#allocation3], 1
    %1437 = vsyncpa [#allocation6], 1
    %1438 = vsyncpa [#allocation9], 1
    %1439 = vsyncpa [#allocation4], 1

</llo_original>
